<compile_context>
chip_gen: v6e
topology: v6e:2x2x1
jax: 0.10.0
libtpu: 0.0.40
codegen_flags: <defaults>
</compile_context>

<pallas_src>
import jax
import jax.numpy as jnp
from jax import lax
from jax.experimental import pallas as pl
from jax.experimental.pallas import tpu as pltpu


def _depthwise_kernel(
    x_ref,      # (Bt, H, W, Cin)          bf16 input block
    w1_ref,     # (Cin, G)                 bf16, BN1 scale folded in
    pk_ref,     # (4, G)  f32              rows: [b1, a1, b2, a2]
    dw_ref,     # (9, G)  f32              3x3 depthwise taps (kh*3+kw), BN2 scale folded in
    w3t_ref,    # (Cout, G)                bf16, transposed 1x1 weights, BN3 scale folded in
    b3_ref,     # (Cout, 1) f32            BN3 bias
    o_ref,      # (1, Cout, Bt*Ho*Wo) f32  lane-dense (transposed) output block
    pad_ref,    # scratch VMEM (Bt, H+2, W+2, G)  f32
    we_ref,     # scratch VMEM (Bt, H+2, Wo+1, G) f32  (even padded columns)
    wo_ref,     # scratch VMEM (Bt, H+2, Wo,   G) f32  (odd  padded columns)
):
    Bt, H, W, Cin = x_ref.shape
    G = w1_ref.shape[1]
    Ho, Wo = H // 2, W // 2

    b1 = pk_ref[0:1, :]
    a1 = pk_ref[1:2, :]
    b2 = pk_ref[2:3, :]
    a2 = pk_ref[3:4, :]

    # ---- stage 1: 1x1 conv (Cin -> G) + BN + PReLU  (MXU, bf16 x bf16 -> f32) ----
    xm = x_ref[...].reshape(Bt * H * W, Cin)
    y = jnp.dot(xm, w1_ref[...], preferred_element_type=jnp.float32)   # (Bt*H*W, G)
    y = y + b1                                                         # BN1 (scale folded)
    y = jnp.where(y > 0, y, a1 * y)                                    # PReLU1

    # ---- stage 2: 3x3 depthwise conv, stride 2, pad 1 + BN + PReLU (VPU, f32) ----
    # Only the top padding row and left padding column are ever read (H, W even,
    # stride 2, pad 1), so only those are zeroed; the interior is fully rewritten.
    pad_ref[:, 0:1, :, :] = jnp.zeros((Bt, 1, W + 2, G), jnp.float32)
    pad_ref[:, :, 0:1, :] = jnp.zeros((Bt, H + 2, 1, G), jnp.float32)
    pad_ref[:, 1:H + 1, 1:W + 1, :] = y.reshape(Bt, H, W, G)

    # Split padded columns into even / odd W phases so each of the 9 taps below
    # only needs an H-stride-2 window: only stride-2 output positions are computed.
    we_ref[...] = pad_ref[:, :, pl.ds(0, Wo + 1, stride=2), :]   # cols 0,2,...,W
    wo_ref[...] = pad_ref[:, :, pl.ds(1, Wo, stride=2), :]       # cols 1,3,...,W-1

    acc = jnp.zeros((Bt, Ho, Wo, G), jnp.float32)
    for kh in range(3):
        rows_e = we_ref[:, pl.ds(kh, Ho, stride=2), :, :]        # (Bt, Ho, Wo+1, G)
        rows_o = wo_ref[:, pl.ds(kh, Ho, stride=2), :, :]        # (Bt, Ho, Wo,   G)
        acc = acc + rows_e[:, :, 0:Wo, :] * dw_ref[3 * kh + 0]       # kw = 0
        acc = acc + rows_o * dw_ref[3 * kh + 1]                      # kw = 1
        acc = acc + rows_e[:, :, 1:Wo + 1, :] * dw_ref[3 * kh + 2]   # kw = 2

    h2 = acc + b2                                                # BN2 (scale folded)
    h2 = jnp.where(h2 > 0, h2, a2 * h2)                          # PReLU2

    # ---- stage 3: 1x1 conv (G -> Cout) + BN, computed transposed (lane-dense
    # store, lane dim = Bt*Ho*Wo, a 128 multiple) via an MXU-native NT matmul:
    # contract w3t (Cout, G) with z (M, G) on G -> (Cout, M); no XLU value
    # transpose of the activations. ----
    z = h2.reshape(Bt * Ho * Wo, G).astype(jnp.bfloat16)
    out_t = lax.dot_general(
        w3t_ref[...], z,
        dimension_numbers=(((1,), (1,)), ((), ())),
        preferred_element_type=jnp.float32)
    o_ref[0] = out_t + b3_ref[...]                               # (Cout, Bt*Ho*Wo)


def _pick_batch_tile(n, out_rows):
    """Largest divisor of n (<= 8) giving a lane-dense output (bt*Ho*Wo >= 128),
    preferring >= 2 grid steps (megacore sharding on v7x) when achievable."""
    divs = [d for d in range(1, min(n, 8) + 1) if n % d == 0]
    for d in reversed(divs):
        if d * out_rows >= 128 and n // d >= 2:
            return d
    for d in reversed(divs):
        if d * out_rows >= 128:
            return d
    return divs[-1]


def run_depthwise_pallas(x_nhwc, w1, s1, b1, a1, dw, s2, b2, a2, w3, s3, b3,
                         *, block_n=None, vmem_limit_bytes=32 * 1024 * 1024):
    """Fused DepthWise forward. x_nhwc: (N,H,W,Cin) f32 -> NCHW (N,Cout,Ho,Wo) f32."""
    N, H, W, Cin = x_nhwc.shape
    G = w1.shape[1]
    Cout = w3.shape[1]
    assert H % 2 == 0 and W % 2 == 0, "stride-2 / pad-1 kernel assumes even H, W"
    Ho, Wo = H // 2, W // 2

    Bt = _pick_batch_tile(N, Ho * Wo) if block_n is None else block_n
    assert N % Bt == 0
    NB = N // Bt
    M = Bt * Ho * Wo

    # Host-side prep: fold BN scales into conv weights, cast MXU operands to
    # bf16, pack the small per-channel vectors into two arrays.
    w1e = (w1 * s1.reshape(1, G)).astype(jnp.bfloat16)                    # (Cin, G)
    dwe = (dw * s2.reshape(1, 1, G)).reshape(9, G).astype(jnp.float32)    # (9, G)
    w3te = (w3.T * s3.reshape(Cout, 1)).astype(jnp.bfloat16)              # (Cout, G)
    pk = jnp.stack([b1, a1, b2, a2]).astype(jnp.float32)                  # (4, G)
    b3c = b3.reshape(Cout, 1).astype(jnp.float32)
    xb = x_nhwc.astype(jnp.bfloat16)

    def full(shape):
        return pl.BlockSpec(shape, lambda n: (0,) * len(shape))

    # TODO(synk): for production MobileFaceNet shapes (H=W=112, G>=128) tile the
    # grid over H-row blocks with a 1-row halo to keep scratch within v7x's
    # 64 MiB VMEM; at these sizes the whole image block fits comfortably.
    grid_spec = pltpu.PrefetchScalarGridSpec(
        num_scalar_prefetch=0,
        grid=(NB,),
        in_specs=[
            pl.BlockSpec((Bt, H, W, Cin), lambda n: (n, 0, 0, 0)),
            full((Cin, G)),
            full((4, G)),
            full((9, G)),
            full((Cout, G)),
            full((Cout, 1)),
        ],
        out_specs=pl.BlockSpec((1, Cout, M), lambda n: (n, 0, 0)),
        scratch_shapes=[
            pltpu.VMEM((Bt, H + 2, W + 2, G), jnp.float32),
            pltpu.VMEM((Bt, H + 2, Wo + 1, G), jnp.float32),
            pltpu.VMEM((Bt, H + 2, Wo, G), jnp.float32),
        ],
    )
    out_flat = pl.pallas_call(
        _depthwise_kernel,
        out_shape=jax.ShapeDtypeStruct((NB, Cout, M), jnp.float32),
        grid_spec=grid_spec,
        compiler_params=pltpu.CompilerParams(
            dimension_semantics=("parallel",),
            vmem_limit_bytes=vmem_limit_bytes,
        ),
    )(xb, w1e, pk, dwe, w3te, b3c)

    # (NB, Cout, Bt*Ho*Wo) -> (N, Cout, Ho, Wo): already channel-major (NCHW).
    out = out_flat.reshape(NB, Cout, Bt, Ho, Wo)
    out = jnp.transpose(out, (0, 2, 1, 3, 4)).reshape(N, Cout, Ho, Wo)
    return out


def depthwise_forward(x_nchw, params, residual=False):
    """Full module forward: NCHW in -> NCHW out.

    params = (w1 (Cin,G), s1,b1,a1 (G,), dw (3,3,G), s2,b2,a2 (G,),
              w3 (G,Cout), s3,b3 (Cout,)).
    """
    if residual:
        # TODO(synk): residual path requires stride=(1,1) and in_c == out_c;
        # this kernel implements the module defaults (stride=(2,2), residual=False).
        raise NotImplementedError(
            "residual=True needs stride=(1,1) and in_c == out_c")
    x_nhwc = jnp.transpose(x_nchw, (0, 2, 3, 1))
    return run_depthwise_pallas(x_nhwc, *params)


def reference_forward_nhwc(x_nhwc, w1, s1, b1, a1, dw, s2, b2, a2, w3, s3, b3):
    """Pure-JAX f32 reference (same eval-mode BN folding)."""
    dn = ('NHWC', 'HWIO', 'NHWC')
    G = w1.shape[1]
    h = jax.lax.conv_general_dilated(
        x_nhwc, w1.reshape(1, 1, *w1.shape), (1, 1), 'VALID',
        dimension_numbers=dn, precision=jax.lax.Precision.HIGHEST)
    h = h * s1 + b1
    h = jnp.where(h > 0, h, a1 * h)
    h = jax.lax.conv_general_dilated(
        h, dw.reshape(3, 3, 1, G), (2, 2), ((1, 1), (1, 1)),
        dimension_numbers=dn, feature_group_count=G,
        precision=jax.lax.Precision.HIGHEST)
    h = h * s2 + b2
    h = jnp.where(h > 0, h, a2 * h)
    h = jax.lax.conv_general_dilated(
        h, w3.reshape(1, 1, *w3.shape), (1, 1), 'VALID',
        dimension_numbers=dn, precision=jax.lax.Precision.HIGHEST)
    return h * s3 + b3


def _fold_bn(gamma, beta, mean, var, eps=1e-5):
    scale = gamma / jnp.sqrt(var + eps)
    bias = beta - mean * scale
    return scale, bias


if __name__ == "__main__":
    key = jax.random.PRNGKey(0)
    k = jax.random.split(key, 20)

    # Small shapes: DepthWise(in_c=16, out_c=32, groups=32) on a 2x16x16x16 NCHW input.
    N, Cin, H, W = 2, 16, 16, 16
    G, Cout = 32, 32

    x_nchw = jax.random.normal(k[0], (N, Cin, H, W), jnp.float32)

    # --- deterministic parameter init (PyTorch layouts, then converted) ---
    w1_pt = jax.random.normal(k[1], (G, Cin, 1, 1), jnp.float32) * 0.2     # Conv2d(in_c, G, 1x1)
    g1 = jax.random.uniform(k[2], (G,), minval=0.5, maxval=1.5)
    be1 = jax.random.normal(k[3], (G,)) * 0.1
    m1 = jax.random.normal(k[4], (G,)) * 0.1
    v1 = jax.random.uniform(k[5], (G,), minval=0.5, maxval=1.5)
    a1 = jnp.full((G,), 0.25, jnp.float32)                                 # PReLU default init

    dw_pt = jax.random.normal(k[6], (G, 1, 3, 3), jnp.float32) * 0.2       # depthwise Conv2d(G, G, 3x3)
    g2 = jax.random.uniform(k[7], (G,), minval=0.5, maxval=1.5)
    be2 = jax.random.normal(k[8], (G,)) * 0.1
    m2 = jax.random.normal(k[9], (G,)) * 0.1
    v2 = jax.random.uniform(k[10], (G,), minval=0.5, maxval=1.5)
    a2 = jnp.full((G,), 0.25, jnp.float32)

    w3_pt = jax.random.normal(k[11], (Cout, G, 1, 1), jnp.float32) * 0.2   # Conv2d(G, out_c, 1x1)
    g3 = jax.random.uniform(k[12], (Cout,), minval=0.5, maxval=1.5)
    be3 = jax.random.normal(k[13], (Cout,)) * 0.1
    m3 = jax.random.normal(k[14], (Cout,)) * 0.1
    v3 = jax.random.uniform(k[15], (Cout,), minval=0.5, maxval=1.5)

    # convert PyTorch layouts -> kernel layouts
    w1 = jnp.transpose(w1_pt[:, :, 0, 0], (1, 0))          # (Cin, G)
    dw = jnp.transpose(dw_pt[:, 0], (1, 2, 0))             # (3, 3, G)
    w3 = jnp.transpose(w3_pt[:, :, 0, 0], (1, 0))          # (G, Cout)
    s1, b1 = _fold_bn(g1, be1, m1, v1)
    s2, b2 = _fold_bn(g2, be2, m2, v2)
    s3, b3 = _fold_bn(g3, be3, m3, v3)

    params = (w1, s1, b1, a1, dw, s2, b2, a2, w3, s3, b3)

    out_nchw = jax.block_until_ready(depthwise_forward(x_nchw, params, residual=False))
    assert out_nchw.shape == (N, Cout, H // 2, W // 2), out_nchw.shape

    # correctness check against the pure-JAX f32 reference; tolerance relaxed for
    # the bf16 MXU operands (f32 accumulation).
    x_nhwc = jnp.transpose(x_nchw, (0, 2, 3, 1))
    ref_nhwc = reference_forward_nhwc(x_nhwc, *params)
    ref_nchw = jnp.transpose(ref_nhwc, (0, 3, 1, 2))
    if not jnp.allclose(out_nchw, ref_nchw, atol=5e-2, rtol=5e-2):
        max_err = float(jnp.max(jnp.abs(out_nchw - ref_nchw)))
        raise AssertionError(f"Pallas output mismatch vs reference, max abs err={max_err}")

    print("KERNEL_OK")
</pallas_src>

<mosaic_0001>
module attributes {stable_mosaic.version = 11 : i64} {
  func.func @_depthwise_kernel(%arg0: i32, %arg1: memref<2x16x16x16xbf16, #tpu.memory_space<vmem>>, %arg2: memref<16x32xbf16, #tpu.memory_space<vmem>>, %arg3: memref<4x32xf32, #tpu.memory_space<vmem>>, %arg4: memref<9x32xf32, #tpu.memory_space<vmem>>, %arg5: memref<32x32xbf16, #tpu.memory_space<vmem>>, %arg6: memref<32x1xf32, #tpu.memory_space<vmem>>, %arg7: memref<1x32x128xf32, #tpu.memory_space<vmem>>, %arg8: memref<2x18x18x32xf32, #tpu.memory_space<vmem>>, %arg9: memref<2x18x9x32xf32, #tpu.memory_space<vmem>>, %arg10: memref<2x18x8x32xf32, #tpu.memory_space<vmem>>) attributes {dimension_semantics = [#tpu.dimension_semantics<parallel>], iteration_bounds = array<i64: 1>, scalar_prefetch = 0 : i64, scratch_operands = 3 : i64, tpu.core_type = #tpu.core_type<tc>, window_params = [{transform_indices = @transform_0, window_bounds = array<i64: 2, 16, 16, 16>}, {pipeline_mode = #tpu.pipeline_mode<synchronous>, transform_indices = @transform_1, window_bounds = array<i64: 16, 32>}, {pipeline_mode = #tpu.pipeline_mode<synchronous>, transform_indices = @transform_2, window_bounds = array<i64: 4, 32>}, {pipeline_mode = #tpu.pipeline_mode<synchronous>, transform_indices = @transform_3, window_bounds = array<i64: 9, 32>}, {pipeline_mode = #tpu.pipeline_mode<synchronous>, transform_indices = @transform_4, window_bounds = array<i64: 32, 32>}, {pipeline_mode = #tpu.pipeline_mode<synchronous>, transform_indices = @transform_5, window_bounds = array<i64: 32, 1>}, {transform_indices = @transform_6, window_bounds = array<i64: 1, 32, 128>}]} {
    %c0 = arith.constant 0 : index
    %c0_0 = arith.constant 0 : index
    %0 = vector.load %arg3[%c0, %c0_0] : memref<4x32xf32, #tpu.memory_space<vmem>>, vector<1x32xf32>
    %c1 = arith.constant 1 : index
    %c0_1 = arith.constant 0 : index
    %1 = vector.load %arg3[%c1, %c0_1] : memref<4x32xf32, #tpu.memory_space<vmem>>, vector<1x32xf32>
    %c2 = arith.constant 2 : index
    %c0_2 = arith.constant 0 : index
    %2 = vector.load %arg3[%c2, %c0_2] : memref<4x32xf32, #tpu.memory_space<vmem>>, vector<1x32xf32>
    %c3 = arith.constant 3 : index
    %c0_3 = arith.constant 0 : index
    %3 = vector.load %arg3[%c3, %c0_3] : memref<4x32xf32, #tpu.memory_space<vmem>>, vector<1x32xf32>
    %c0_4 = arith.constant 0 : index
    %c0_5 = arith.constant 0 : index
    %c0_6 = arith.constant 0 : index
    %c0_7 = arith.constant 0 : index
    %4 = vector.load %arg1[%c0_4, %c0_5, %c0_6, %c0_7] : memref<2x16x16x16xbf16, #tpu.memory_space<vmem>>, vector<2x16x16x16xbf16>
    %5 = vector.shape_cast %4 : vector<2x16x16x16xbf16> to vector<512x16xbf16>
    %c0_8 = arith.constant 0 : index
    %c0_9 = arith.constant 0 : index
    %6 = vector.load %arg2[%c0_8, %c0_9] : memref<16x32xbf16, #tpu.memory_space<vmem>>, vector<16x32xbf16>
    %cst = arith.constant dense<0.000000e+00> : vector<512x32xf32>
    %7 = tpu.matmul %5, %6, %cst {dimension_numbers = #tpu.dot_dimension_numbers<[1], [0], [0], [1], [0, 0, 1, 1], [], []>} : vector<512x16xbf16>, vector<16x32xbf16>, vector<512x32xf32> -> vector<512x32xf32>
    %8 = vector.broadcast %0 : vector<1x32xf32> to vector<512x32xf32>
    %9 = arith.addf %7, %8 : vector<512x32xf32>
    %cst_10 = arith.constant 0.000000e+00 : f32
    %10 = vector.broadcast %cst_10 : f32 to vector<512x32xf32>
    %11 = arith.cmpf ogt, %9, %10 : vector<512x32xf32>
    %12 = vector.broadcast %1 : vector<1x32xf32> to vector<512x32xf32>
    %13 = arith.mulf %12, %9 : vector<512x32xf32>
    %14 = arith.select %11, %9, %13 : vector<512x32xi1>, vector<512x32xf32>
    %cst_11 = arith.constant 0.000000e+00 : f32
    %15 = vector.broadcast %cst_11 : f32 to vector<2x1x18x32xf32>
    %c0_12 = arith.constant 0 : index
    %c0_13 = arith.constant 0 : index
    %c0_14 = arith.constant 0 : index
    %c0_15 = arith.constant 0 : index
    %16 = vector.load %arg8[%c0_12, %c0_13, %c0_14, %c0_15] : memref<2x18x18x32xf32, #tpu.memory_space<vmem>>, vector<2x1x18x32xf32>
    tpu.vector_store %arg8[%c0_12, %c0_13, %c0_14, %c0_15], %15 {strides = array<i32>} : memref<2x18x18x32xf32, #tpu.memory_space<vmem>>, vector<2x1x18x32xf32>,
    %cst_16 = arith.constant 0.000000e+00 : f32
    %17 = vector.broadcast %cst_16 : f32 to vector<2x18x1x32xf32>
    %c0_17 = arith.constant 0 : index
    %c0_18 = arith.constant 0 : index
    %c0_19 = arith.constant 0 : index
    %c0_20 = arith.constant 0 : index
    %18 = vector.load %arg8[%c0_17, %c0_18, %c0_19, %c0_20] : memref<2x18x18x32xf32, #tpu.memory_space<vmem>>, vector<2x18x1x32xf32>
    tpu.vector_store %arg8[%c0_17, %c0_18, %c0_19, %c0_20], %17 {strides = array<i32>} : memref<2x18x18x32xf32, #tpu.memory_space<vmem>>, vector<2x18x1x32xf32>,
    %19 = vector.shape_cast %14 : vector<512x32xf32> to vector<2x16x16x32xf32>
    %c0_21 = arith.constant 0 : index
    %c1_22 = arith.constant 1 : index
    %c1_23 = arith.constant 1 : index
    %c0_24 = arith.constant 0 : index
    %20 = vector.load %arg8[%c0_21, %c1_22, %c1_23, %c0_24] : memref<2x18x18x32xf32, #tpu.memory_space<vmem>>, vector<2x16x16x32xf32>
    tpu.vector_store %arg8[%c0_21, %c1_22, %c1_23, %c0_24], %19 {strides = array<i32>} : memref<2x18x18x32xf32, #tpu.memory_space<vmem>>, vector<2x16x16x32xf32>,
    %c0_25 = arith.constant 0 : index
    %c0_26 = arith.constant 0 : index
    %c0_27 = arith.constant 0 : index
    %c0_28 = arith.constant 0 : index
    %21 = tpu.strided_load %arg8[%c0_25, %c0_26, %c0_27, %c0_28] {strides = array<i32: 1, 1, 2, 1>} : memref<2x18x18x32xf32, #tpu.memory_space<vmem>>, vector<2x18x9x32xf32>
    %c0_29 = arith.constant 0 : index
    %c0_30 = arith.constant 0 : index
    %c0_31 = arith.constant 0 : index
    %c0_32 = arith.constant 0 : index
    %22 = vector.load %arg9[%c0_29, %c0_30, %c0_31, %c0_32] : memref<2x18x9x32xf32, #tpu.memory_space<vmem>>, vector<2x18x9x32xf32>
    tpu.vector_store %arg9[%c0_29, %c0_30, %c0_31, %c0_32], %21 {strides = array<i32>} : memref<2x18x9x32xf32, #tpu.memory_space<vmem>>, vector<2x18x9x32xf32>,
    %c0_33 = arith.constant 0 : index
    %c0_34 = arith.constant 0 : index
    %c1_35 = arith.constant 1 : index
    %c0_36 = arith.constant 0 : index
    %23 = tpu.strided_load %arg8[%c0_33, %c0_34, %c1_35, %c0_36] {strides = array<i32: 1, 1, 2, 1>} : memref<2x18x18x32xf32, #tpu.memory_space<vmem>>, vector<2x18x8x32xf32>
    %c0_37 = arith.constant 0 : index
    %c0_38 = arith.constant 0 : index
    %c0_39 = arith.constant 0 : index
    %c0_40 = arith.constant 0 : index
    %24 = vector.load %arg10[%c0_37, %c0_38, %c0_39, %c0_40] : memref<2x18x8x32xf32, #tpu.memory_space<vmem>>, vector<2x18x8x32xf32>
    tpu.vector_store %arg10[%c0_37, %c0_38, %c0_39, %c0_40], %23 {strides = array<i32>} : memref<2x18x8x32xf32, #tpu.memory_space<vmem>>, vector<2x18x8x32xf32>,
    %cst_41 = arith.constant 0.000000e+00 : f32
    %25 = vector.broadcast %cst_41 : f32 to vector<2x8x8x32xf32>
    %c0_42 = arith.constant 0 : index
    %c0_43 = arith.constant 0 : index
    %c0_44 = arith.constant 0 : index
    %c0_45 = arith.constant 0 : index
    %26 = tpu.strided_load %arg9[%c0_42, %c0_43, %c0_44, %c0_45] {strides = array<i32: 1, 2, 1, 1>} : memref<2x18x9x32xf32, #tpu.memory_space<vmem>>, vector<2x8x9x32xf32>
    %c0_46 = arith.constant 0 : index
    %c0_47 = arith.constant 0 : index
    %c0_48 = arith.constant 0 : index
    %c0_49 = arith.constant 0 : index
    %27 = tpu.strided_load %arg10[%c0_46, %c0_47, %c0_48, %c0_49] {strides = array<i32: 1, 2, 1, 1>} : memref<2x18x8x32xf32, #tpu.memory_space<vmem>>, vector<2x8x8x32xf32>
    %28 = vector.extract_strided_slice %26 {offsets = [0, 0, 0, 0], sizes = [2, 8, 8, 32], strides = [1, 1, 1, 1]} : vector<2x8x9x32xf32> to vector<2x8x8x32xf32>
    %c0_50 = arith.constant 0 : index
    %c0_51 = arith.constant 0 : index
    %29 = vector.load %arg4[%c0_50, %c0_51] : memref<9x32xf32, #tpu.memory_space<vmem>>, vector<1x32xf32>
    %30 = vector.shape_cast %29 : vector<1x32xf32> to vector<32xf32>
    %31 = vector.shape_cast %30 : vector<32xf32> to vector<1x1x1x32xf32>
    %32 = vector.broadcast %31 : vector<1x1x1x32xf32> to vector<2x8x8x32xf32>
    %33 = arith.mulf %28, %32 : vector<2x8x8x32xf32>
    %34 = arith.addf %25, %33 : vector<2x8x8x32xf32>
    %c1_52 = arith.constant 1 : index
    %c0_53 = arith.constant 0 : index
    %35 = vector.load %arg4[%c1_52, %c0_53] : memref<9x32xf32, #tpu.memory_space<vmem>>, vector<1x32xf32>
    %36 = vector.shape_cast %35 : vector<1x32xf32> to vector<32xf32>
    %37 = vector.shape_cast %36 : vector<32xf32> to vector<1x1x1x32xf32>
    %38 = vector.broadcast %37 : vector<1x1x1x32xf32> to vector<2x8x8x32xf32>
    %39 = arith.mulf %27, %38 : vector<2x8x8x32xf32>
    %40 = arith.addf %34, %39 : vector<2x8x8x32xf32>
    %41 = vector.extract_strided_slice %26 {offsets = [0, 0, 1, 0], sizes = [2, 8, 8, 32], strides = [1, 1, 1, 1]} : vector<2x8x9x32xf32> to vector<2x8x8x32xf32>
    %c2_54 = arith.constant 2 : index
    %c0_55 = arith.constant 0 : index
    %42 = vector.load %arg4[%c2_54, %c0_55] : memref<9x32xf32, #tpu.memory_space<vmem>>, vector<1x32xf32>
    %43 = vector.shape_cast %42 : vector<1x32xf32> to vector<32xf32>
    %44 = vector.shape_cast %43 : vector<32xf32> to vector<1x1x1x32xf32>
    %45 = vector.broadcast %44 : vector<1x1x1x32xf32> to vector<2x8x8x32xf32>
    %46 = arith.mulf %41, %45 : vector<2x8x8x32xf32>
    %47 = arith.addf %40, %46 : vector<2x8x8x32xf32>
    %c0_56 = arith.constant 0 : index
    %c1_57 = arith.constant 1 : index
    %c0_58 = arith.constant 0 : index
    %c0_59 = arith.constant 0 : index
    %48 = tpu.strided_load %arg9[%c0_56, %c1_57, %c0_58, %c0_59] {strides = array<i32: 1, 2, 1, 1>} : memref<2x18x9x32xf32, #tpu.memory_space<vmem>>, vector<2x8x9x32xf32>
    %c0_60 = arith.constant 0 : index
    %c1_61 = arith.constant 1 : index
    %c0_62 = arith.constant 0 : index
    %c0_63 = arith.constant 0 : index
    %49 = tpu.strided_load %arg10[%c0_60, %c1_61, %c0_62, %c0_63] {strides = array<i32: 1, 2, 1, 1>} : memref<2x18x8x32xf32, #tpu.memory_space<vmem>>, vector<2x8x8x32xf32>
    %50 = vector.extract_strided_slice %48 {offsets = [0, 0, 0, 0], sizes = [2, 8, 8, 32], strides = [1, 1, 1, 1]} : vector<2x8x9x32xf32> to vector<2x8x8x32xf32>
    %c3_64 = arith.constant 3 : index
    %c0_65 = arith.constant 0 : index
    %51 = vector.load %arg4[%c3_64, %c0_65] : memref<9x32xf32, #tpu.memory_space<vmem>>, vector<1x32xf32>
    %52 = vector.shape_cast %51 : vector<1x32xf32> to vector<32xf32>
    %53 = vector.shape_cast %52 : vector<32xf32> to vector<1x1x1x32xf32>
    %54 = vector.broadcast %53 : vector<1x1x1x32xf32> to vector<2x8x8x32xf32>
    %55 = arith.mulf %50, %54 : vector<2x8x8x32xf32>
    %56 = arith.addf %47, %55 : vector<2x8x8x32xf32>
    %c4 = arith.constant 4 : index
    %c0_66 = arith.constant 0 : index
    %57 = vector.load %arg4[%c4, %c0_66] : memref<9x32xf32, #tpu.memory_space<vmem>>, vector<1x32xf32>
    %58 = vector.shape_cast %57 : vector<1x32xf32> to vector<32xf32>
    %59 = vector.shape_cast %58 : vector<32xf32> to vector<1x1x1x32xf32>
    %60 = vector.broadcast %59 : vector<1x1x1x32xf32> to vector<2x8x8x32xf32>
    %61 = arith.mulf %49, %60 : vector<2x8x8x32xf32>
    %62 = arith.addf %56, %61 : vector<2x8x8x32xf32>
    %63 = vector.extract_strided_slice %48 {offsets = [0, 0, 1, 0], sizes = [2, 8, 8, 32], strides = [1, 1, 1, 1]} : vector<2x8x9x32xf32> to vector<2x8x8x32xf32>
    %c5 = arith.constant 5 : index
    %c0_67 = arith.constant 0 : index
    %64 = vector.load %arg4[%c5, %c0_67] : memref<9x32xf32, #tpu.memory_space<vmem>>, vector<1x32xf32>
    %65 = vector.shape_cast %64 : vector<1x32xf32> to vector<32xf32>
    %66 = vector.shape_cast %65 : vector<32xf32> to vector<1x1x1x32xf32>
    %67 = vector.broadcast %66 : vector<1x1x1x32xf32> to vector<2x8x8x32xf32>
    %68 = arith.mulf %63, %67 : vector<2x8x8x32xf32>
    %69 = arith.addf %62, %68 : vector<2x8x8x32xf32>
    %c0_68 = arith.constant 0 : index
    %c2_69 = arith.constant 2 : index
    %c0_70 = arith.constant 0 : index
    %c0_71 = arith.constant 0 : index
    %70 = tpu.strided_load %arg9[%c0_68, %c2_69, %c0_70, %c0_71] {strides = array<i32: 1, 2, 1, 1>} : memref<2x18x9x32xf32, #tpu.memory_space<vmem>>, vector<2x8x9x32xf32>
    %c0_72 = arith.constant 0 : index
    %c2_73 = arith.constant 2 : index
    %c0_74 = arith.constant 0 : index
    %c0_75 = arith.constant 0 : index
    %71 = tpu.strided_load %arg10[%c0_72, %c2_73, %c0_74, %c0_75] {strides = array<i32: 1, 2, 1, 1>} : memref<2x18x8x32xf32, #tpu.memory_space<vmem>>, vector<2x8x8x32xf32>
    %72 = vector.extract_strided_slice %70 {offsets = [0, 0, 0, 0], sizes = [2, 8, 8, 32], strides = [1, 1, 1, 1]} : vector<2x8x9x32xf32> to vector<2x8x8x32xf32>
    %c6 = arith.constant 6 : index
    %c0_76 = arith.constant 0 : index
    %73 = vector.load %arg4[%c6, %c0_76] : memref<9x32xf32, #tpu.memory_space<vmem>>, vector<1x32xf32>
    %74 = vector.shape_cast %73 : vector<1x32xf32> to vector<32xf32>
    %75 = vector.shape_cast %74 : vector<32xf32> to vector<1x1x1x32xf32>
    %76 = vector.broadcast %75 : vector<1x1x1x32xf32> to vector<2x8x8x32xf32>
    %77 = arith.mulf %72, %76 : vector<2x8x8x32xf32>
    %78 = arith.addf %69, %77 : vector<2x8x8x32xf32>
    %c7 = arith.constant 7 : index
    %c0_77 = arith.constant 0 : index
    %79 = vector.load %arg4[%c7, %c0_77] : memref<9x32xf32, #tpu.memory_space<vmem>>, vector<1x32xf32>
    %80 = vector.shape_cast %79 : vector<1x32xf32> to vector<32xf32>
    %81 = vector.shape_cast %80 : vector<32xf32> to vector<1x1x1x32xf32>
    %82 = vector.broadcast %81 : vector<1x1x1x32xf32> to vector<2x8x8x32xf32>
    %83 = arith.mulf %71, %82 : vector<2x8x8x32xf32>
    %84 = arith.addf %78, %83 : vector<2x8x8x32xf32>
    %85 = vector.extract_strided_slice %70 {offsets = [0, 0, 1, 0], sizes = [2, 8, 8, 32], strides = [1, 1, 1, 1]} : vector<2x8x9x32xf32> to vector<2x8x8x32xf32>
    %c8 = arith.constant 8 : index
    %c0_78 = arith.constant 0 : index
    %86 = vector.load %arg4[%c8, %c0_78] : memref<9x32xf32, #tpu.memory_space<vmem>>, vector<1x32xf32>
    %87 = vector.shape_cast %86 : vector<1x32xf32> to vector<32xf32>
    %88 = vector.shape_cast %87 : vector<32xf32> to vector<1x1x1x32xf32>
    %89 = vector.broadcast %88 : vector<1x1x1x32xf32> to vector<2x8x8x32xf32>
    %90 = arith.mulf %85, %89 : vector<2x8x8x32xf32>
    %91 = arith.addf %84, %90 : vector<2x8x8x32xf32>
    %92 = vector.shape_cast %2 : vector<1x32xf32> to vector<1x1x1x32xf32>
    %93 = vector.broadcast %92 : vector<1x1x1x32xf32> to vector<2x8x8x32xf32>
    %94 = arith.addf %91, %93 : vector<2x8x8x32xf32>
    %cst_79 = arith.constant 0.000000e+00 : f32
    %95 = vector.broadcast %cst_79 : f32 to vector<2x8x8x32xf32>
    %96 = arith.cmpf ogt, %94, %95 : vector<2x8x8x32xf32>
    %97 = vector.shape_cast %3 : vector<1x32xf32> to vector<1x1x1x32xf32>
    %98 = vector.broadcast %97 : vector<1x1x1x32xf32> to vector<2x8x8x32xf32>
    %99 = arith.mulf %98, %94 : vector<2x8x8x32xf32>
    %100 = arith.select %96, %94, %99 : vector<2x8x8x32xi1>, vector<2x8x8x32xf32>
    %101 = vector.shape_cast %100 : vector<2x8x8x32xf32> to vector<128x32xf32>
    %102 = arith.truncf %101 : vector<128x32xf32> to vector<128x32xbf16>
    %c0_80 = arith.constant 0 : index
    %c0_81 = arith.constant 0 : index
    %103 = vector.load %arg5[%c0_80, %c0_81] : memref<32x32xbf16, #tpu.memory_space<vmem>>, vector<32x32xbf16>
    %cst_82 = arith.constant dense<0.000000e+00> : vector<32x128xf32>
    %104 = tpu.matmul %103, %102, %cst_82 {dimension_numbers = #tpu.dot_dimension_numbers<[1], [1], [0], [0], [0, 0, 1, 0], [], []>} : vector<32x32xbf16>, vector<128x32xbf16>, vector<32x128xf32> -> vector<32x128xf32>
    %c0_83 = arith.constant 0 : index
    %c0_84 = arith.constant 0 : index
    %105 = vector.load %arg6[%c0_83, %c0_84] : memref<32x1xf32, #tpu.memory_space<vmem>>, vector<32x1xf32>
    %106 = vector.broadcast %105 : vector<32x1xf32> to vector<32x128xf32>
    %107 = arith.addf %104, %106 : vector<32x128xf32>
    %c0_85 = arith.constant 0 : index
    %c0_86 = arith.constant 0 : index
    %c0_87 = arith.constant 0 : index
    %108 = vector.load %arg7[%c0_85, %c0_86, %c0_87] : memref<1x32x128xf32, #tpu.memory_space<vmem>>, vector<1x32x128xf32>
    %109 = vector.shape_cast %108 : vector<1x32x128xf32> to vector<32x128xf32>
    %110 = vector.shape_cast %107 : vector<32x128xf32> to vector<1x32x128xf32>
    tpu.vector_store %arg7[%c0_85, %c0_86, %c0_87], %110 {strides = array<i32>} : memref<1x32x128xf32, #tpu.memory_space<vmem>>, vector<1x32x128xf32>,
    return
  }
  func.func @transform_0(%arg0: i32) -> (i32, i32, i32, i32) {
    %c0_i32 = arith.constant 0 : i32
    %c0_i32_0 = arith.constant 0 : i32
    %c0_i32_1 = arith.constant 0 : i32
    %c0_i32_2 = arith.constant 0 : i32
    return %arg0, %c0_i32, %c0_i32_0, %c0_i32_1 : i32, i32, i32, i32
  }
  func.func @transform_1(%arg0: i32) -> (i32, i32) {
    %c0_i32 = arith.constant 0 : i32
    %c0_i32_0 = arith.constant 0 : i32
    %c0_i32_1 = arith.constant 0 : i32
    return %c0_i32, %c0_i32_0 : i32, i32
  }
  func.func @transform_2(%arg0: i32) -> (i32, i32) {
    %c0_i32 = arith.constant 0 : i32
    %c0_i32_0 = arith.constant 0 : i32
    %c0_i32_1 = arith.constant 0 : i32
    return %c0_i32, %c0_i32_0 : i32, i32
  }
  func.func @transform_3(%arg0: i32) -> (i32, i32) {
    %c0_i32 = arith.constant 0 : i32
    %c0_i32_0 = arith.constant 0 : i32
    %c0_i32_1 = arith.constant 0 : i32
    return %c0_i32, %c0_i32_0 : i32, i32
  }
  func.func @transform_4(%arg0: i32) -> (i32, i32) {
    %c0_i32 = arith.constant 0 : i32
    %c0_i32_0 = arith.constant 0 : i32
    %c0_i32_1 = arith.constant 0 : i32
    return %c0_i32, %c0_i32_0 : i32, i32
  }
  func.func @transform_5(%arg0: i32) -> (i32, i32) {
    %c0_i32 = arith.constant 0 : i32
    %c0_i32_0 = arith.constant 0 : i32
    %c0_i32_1 = arith.constant 0 : i32
    return %c0_i32, %c0_i32_0 : i32, i32
  }
  func.func @transform_6(%arg0: i32) -> (i32, i32, i32) {
    %c0_i32 = arith.constant 0 : i32
    %c0_i32_0 = arith.constant 0 : i32
    %c0_i32_1 = arith.constant 0 : i32
    return %arg0, %c0_i32, %c0_i32_0 : i32, i32, i32
  }
}

</mosaic_0001>

<llo_original>
// kernel: tpu_custom_call.1
$region0: #{tpu_custom_call.1}
  #allocation0 [shape = 'u32[]', space=smem, size = 0x4, offset = 0x4, fixed_abs, tag = 'smem constant byte address 0x4 - core index']
  #allocation1 [shape = 'u32[144,128]{1,0:T(1,128)}', space=vmem, size = 0x12000, scoped, tag = 'internal scratch']
  #allocation2 [shape = 'f32[2,18,18,32]{3,2,1,0:T(8,128)}', space=vmem, size = 0x6c000, scoped, tag = 'scratch operand']
  #allocation3 [shape = 'f32[2,18,9,32]{3,2,1,0:T(8,128)}', space=vmem, size = 0x48000, scoped, tag = 'scratch operand']
  #allocation4 [shape = 'f32[2,18,8,32]{3,2,1,0:T(8,128)}', space=vmem, size = 0x24000, scoped, tag = 'scratch operand']
  %s0 = inlined_call_operand.hbm [shape: bf16[2,16,16,16], index: 0, kind: input, shape index: {}]
  %s1 = inlined_call_operand.hbm [shape: bf16[16,32], index: 1, kind: input, shape index: {}]
  %s2 = inlined_call_operand.vmem [shape: f32[4,32], index: 2, kind: input, shape index: {}]
  %s3 = inlined_call_operand.vmem [shape: f32[9,32], index: 3, kind: input, shape index: {}]
  %s4 = inlined_call_operand.vmem [shape: bf16[32,32], index: 4, kind: input, shape index: {}]
  %s5 = inlined_call_operand.vmem [shape: f32[32,1], index: 5, kind: input, shape index: {}]
  %s6 = inlined_call_operand.hbm [shape: f32[1,32,128], index: 6, kind: output, shape index: {}]
  %s7 = sld [smem:[#allocation0]]
  $region42: #{tpu_custom_call.1} parent=0
    _
  %s9 = ssub.s32 1, %s7
  %s10 = scalar_select 0, %s9, %s7
  $region1: #{tpu_custom_call.1} parent=0
    #allocation5 [shape = 'u8[131072]{0}', space=vmem, size = 0x20000, scoped, tag = 'input window, operand 0, single buffered']
    #allocation6 [shape = 's32[1]{0}', space=sflag, size = 0x4, scoped, tag = 'scoped memory for tpu_custom_call.1']
    #allocation7 [shape = 's32[1]{0}', space=sflag, size = 0x4, scoped, tag = 'scoped memory for tpu_custom_call.1']
    #allocation8 [shape = 'u8[4096]{0}', space=vmem, size = 0x1000, scoped, tag = 'input window, operand 1, single buffered']
    #allocation9 [shape = 's32[1]{0}', space=sflag, size = 0x4, scoped, tag = 'scoped memory for tpu_custom_call.1']
    #allocation10 [shape = 'u8[16384]{0}', space=vmem, size = 0x4000, scoped, tag = 'output window, operand 0, single buffered']
    %11 = vsyncpa [#allocation6], 0
    %12 = vsyncpa [#allocation9], 0
    %13 = vsyncpa [#allocation7], 0
    // Predicated region
    $region2: #{tpu_custom_call.1} parent=1 // pred_check
      _
    $region3: #{tpu_custom_call.1} parent=1 // pred_check_branch
      %15 = sbr.rel (0) target = $region5
    $region4: #{tpu_custom_call.1} parent=1 // pred_region
      %s17 = ssub.s32 4096, 4096
      %18 = vsyncadd [#allocation6], %s17
      %s19 = sshll.u32 [#allocation5], 4
      %s20 = int_to_ptr.vmem [resolvable:$true] %s19
      %25 = dma.hbm_to_vmem [thread:$0]  %s0, 4096, %s20, [#allocation6], 64, 64, 4
    $region5: #{tpu_custom_call.1} parent=1 // pred_fallthru
      _
    // Predicated region
    $region6: #{tpu_custom_call.1} parent=1 // pred_check
      _
    $region7: #{tpu_custom_call.1} parent=1 // pred_check_branch
      %27 = sbr.rel (0) target = $region9
    $region8: #{tpu_custom_call.1} parent=1 // pred_region
      %s29 = ssub.s32 128, 128
      %30 = vsyncadd [#allocation9], %s29
      %s31 = sshll.u32 [#allocation8], 4
      %s32 = int_to_ptr.vmem [resolvable:$true] %s31
      %37 = dma.hbm_to_vmem [thread:$0]  %s1, 128, %s32, [#allocation9], 64, 64, 4
    $region9: #{tpu_custom_call.1} parent=1 // pred_fallthru
      _
    // Predicated region
    $region10: #{tpu_custom_call.1} parent=1 // pred_check
      _
    $region11: #{tpu_custom_call.1} parent=1 // pred_check_branch
      %39 = sbr.rel (0) target = $region13
    $region12: #{tpu_custom_call.1} parent=1 // pred_region
      _
    $region13: #{tpu_custom_call.1} parent=1 // pred_fallthru
      _
    // Predicated region
    $region14: #{tpu_custom_call.1} parent=1 // pred_check
      _
    $region15: #{tpu_custom_call.1} parent=1 // pred_check_branch
      %41 = sbr.rel (0) target = $region17
    $region16: #{tpu_custom_call.1} parent=1 // pred_region
      _
    $region17: #{tpu_custom_call.1} parent=1 // pred_fallthru
      _
    // Predicated region
    $region18: #{tpu_custom_call.1} parent=1 // pred_check
      _
    $region19: #{tpu_custom_call.1} parent=1 // pred_check_branch
      %43 = sbr.rel (0) target = $region21
    $region20: #{tpu_custom_call.1} parent=1 // pred_region
      _
    $region21: #{tpu_custom_call.1} parent=1 // pred_fallthru
      _
    // Predicated region
    $region22: #{tpu_custom_call.1} parent=1 // pred_check
      _
    $region23: #{tpu_custom_call.1} parent=1 // pred_check_branch
      %45 = sbr.rel (0) target = $region25
    $region24: #{tpu_custom_call.1} parent=1 // pred_region
      _
    $region25: #{tpu_custom_call.1} parent=1 // pred_fallthru
      _
    // Predicated region
    $region26: #{tpu_custom_call.1} parent=1 // pred_check
      _
    $region27: #{tpu_custom_call.1} parent=1 // pred_check_branch
      %47 = sbr.rel (0) target = $region29
    $region28: #{tpu_custom_call.1} parent=1 // pred_region
      %48 = dma.done [#allocation6], 4096
    $region29: #{tpu_custom_call.1} parent=1 // pred_fallthru
      _
    // Predicated region
    $region30: #{tpu_custom_call.1} parent=1 // pred_check
      _
    $region31: #{tpu_custom_call.1} parent=1 // pred_check_branch
      %50 = sbr.rel (0) target = $region33
    $region32: #{tpu_custom_call.1} parent=1 // pred_region
      %51 = dma.done [#allocation9], 128
    $region33: #{tpu_custom_call.1} parent=1 // pred_fallthru
      _
    %v53 = vld [vmem:[%s2] sm:$0x1]
    %v54 = vld [vmem:[%s2 + $0x1] sm:$0x1]
    %v55 = vld [vmem:[%s2 + $0x2] sm:$0x1]
    %v56 = vld [vmem:[%s2 + $0x3] sm:$0x1]
    %v57 = vld [vmem:[#allocation5] sm:$0xf]
    %v58 = vld [vmem:[#allocation5 + $0x4] sm:$0xf]
    %v59 = vld [vmem:[#allocation5 + $0x8] sm:$0xf]
    %v60 = vld [vmem:[#allocation5 + $0xc] sm:$0xf]
    %v61 = vld [vmem:[#allocation5 + $0x10] sm:$0xf]
    %v62 = vld [vmem:[#allocation5 + $0x14] sm:$0xf]
    %v63 = vld [vmem:[#allocation5 + $0x18] sm:$0xf]
    %v64 = vld [vmem:[#allocation5 + $0x1c] sm:$0xf]
    %v65 = vld [vmem:[#allocation5 + $0x20] sm:$0xf]
    %v66 = vld [vmem:[#allocation5 + $0x24] sm:$0xf]
    %v67 = vld [vmem:[#allocation5 + $0x28] sm:$0xf]
    %v68 = vld [vmem:[#allocation5 + $0x2c] sm:$0xf]
    %v69 = vld [vmem:[#allocation5 + $0x30] sm:$0xf]
    %v70 = vld [vmem:[#allocation5 + $0x34] sm:$0xf]
    %v71 = vld [vmem:[#allocation5 + $0x38] sm:$0xf]
    %v72 = vld [vmem:[#allocation5 + $0x3c] sm:$0xf]
    %v73 = vld [vmem:[#allocation5 + $0x40] sm:$0xf]
    %v74 = vld [vmem:[#allocation5 + $0x44] sm:$0xf]
    %v75 = vld [vmem:[#allocation5 + $0x48] sm:$0xf]
    %v76 = vld [vmem:[#allocation5 + $0x4c] sm:$0xf]
    %v77 = vld [vmem:[#allocation5 + $0x50] sm:$0xf]
    %v78 = vld [vmem:[#allocation5 + $0x54] sm:$0xf]
    %v79 = vld [vmem:[#allocation5 + $0x58] sm:$0xf]
    %v80 = vld [vmem:[#allocation5 + $0x5c] sm:$0xf]
    %v81 = vld [vmem:[#allocation5 + $0x60] sm:$0xf]
    %v82 = vld [vmem:[#allocation5 + $0x64] sm:$0xf]
    %v83 = vld [vmem:[#allocation5 + $0x68] sm:$0xf]
    %v84 = vld [vmem:[#allocation5 + $0x6c] sm:$0xf]
    %v85 = vld [vmem:[#allocation5 + $0x70] sm:$0xf]
    %v86 = vld [vmem:[#allocation5 + $0x74] sm:$0xf]
    %v87 = vld [vmem:[#allocation5 + $0x78] sm:$0xf]
    %v88 = vld [vmem:[#allocation5 + $0x7c] sm:$0xf]
    %v89 = vld [vmem:[#allocation5 + $0x80] sm:$0xf]
    %v90 = vld [vmem:[#allocation5 + $0x84] sm:$0xf]
    %v91 = vld [vmem:[#allocation5 + $0x88] sm:$0xf]
    %v92 = vld [vmem:[#allocation5 + $0x8c] sm:$0xf]
    %v93 = vld [vmem:[#allocation5 + $0x90] sm:$0xf]
    %v94 = vld [vmem:[#allocation5 + $0x94] sm:$0xf]
    %v95 = vld [vmem:[#allocation5 + $0x98] sm:$0xf]
    %v96 = vld [vmem:[#allocation5 + $0x9c] sm:$0xf]
    %v97 = vld [vmem:[#allocation5 + $0xa0] sm:$0xf]
    %v98 = vld [vmem:[#allocation5 + $0xa4] sm:$0xf]
    %v99 = vld [vmem:[#allocation5 + $0xa8] sm:$0xf]
    %v100 = vld [vmem:[#allocation5 + $0xac] sm:$0xf]
    %v101 = vld [vmem:[#allocation5 + $0xb0] sm:$0xf]
    %v102 = vld [vmem:[#allocation5 + $0xb4] sm:$0xf]
    %v103 = vld [vmem:[#allocation5 + $0xb8] sm:$0xf]
    %v104 = vld [vmem:[#allocation5 + $0xbc] sm:$0xf]
    %v105 = vld [vmem:[#allocation5 + $0xc0] sm:$0xf]
    %v106 = vld [vmem:[#allocation5 + $0xc4] sm:$0xf]
    %v107 = vld [vmem:[#allocation5 + $0xc8] sm:$0xf]
    %v108 = vld [vmem:[#allocation5 + $0xcc] sm:$0xf]
    %v109 = vld [vmem:[#allocation5 + $0xd0] sm:$0xf]
    %v110 = vld [vmem:[#allocation5 + $0xd4] sm:$0xf]
    %v111 = vld [vmem:[#allocation5 + $0xd8] sm:$0xf]
    %v112 = vld [vmem:[#allocation5 + $0xdc] sm:$0xf]
    %v113 = vld [vmem:[#allocation5 + $0xe0] sm:$0xf]
    %v114 = vld [vmem:[#allocation5 + $0xe4] sm:$0xf]
    %v115 = vld [vmem:[#allocation5 + $0xe8] sm:$0xf]
    %v116 = vld [vmem:[#allocation5 + $0xec] sm:$0xf]
    %v117 = vld [vmem:[#allocation5 + $0xf0] sm:$0xf]
    %v118 = vld [vmem:[#allocation5 + $0xf4] sm:$0xf]
    %v119 = vld [vmem:[#allocation5 + $0xf8] sm:$0xf]
    %v120 = vld [vmem:[#allocation5 + $0xfc] sm:$0xf]
    %v121 = vld [vmem:[#allocation8] sm:$0xf]
    %v122 = vld [vmem:[#allocation8 + $0x4] sm:$0xf]
    %v123 = vlaneseq
    %v124 = vshrl.u32 %v123, 7
    %v125 = vsub.s32 0, %v124
    %v126 = vrot.slane %v53, %v125
    %v191 = vunpack.c.l.b16 %v57
    %v192 = vunpack.c.l.b16 %v58
    %v193 = vunpack.c.l.b16 %v59
    %v194 = vunpack.c.l.b16 %v60
    %v195 = vunpack.c.l.b16 %v61
    %v196 = vunpack.c.l.b16 %v62
    %v197 = vunpack.c.l.b16 %v63
    %v198 = vunpack.c.l.b16 %v64
    %v199 = vunpack.c.l.b16 %v65
    %v200 = vunpack.c.l.b16 %v66
    %v201 = vunpack.c.l.b16 %v67
    %v202 = vunpack.c.l.b16 %v68
    %v203 = vunpack.c.l.b16 %v69
    %v204 = vunpack.c.l.b16 %v70
    %v205 = vunpack.c.l.b16 %v71
    %v206 = vunpack.c.l.b16 %v72
    %v207 = vunpack.c.l.b16 %v73
    %v208 = vunpack.c.l.b16 %v74
    %v209 = vunpack.c.l.b16 %v75
    %v210 = vunpack.c.l.b16 %v76
    %v211 = vunpack.c.l.b16 %v77
    %v212 = vunpack.c.l.b16 %v78
    %v213 = vunpack.c.l.b16 %v79
    %v214 = vunpack.c.l.b16 %v80
    %v215 = vunpack.c.l.b16 %v81
    %v216 = vunpack.c.l.b16 %v82
    %v217 = vunpack.c.l.b16 %v83
    %v218 = vunpack.c.l.b16 %v84
    %v219 = vunpack.c.l.b16 %v85
    %v220 = vunpack.c.l.b16 %v86
    %v221 = vunpack.c.l.b16 %v87
    %v222 = vunpack.c.l.b16 %v88
    %v223 = vunpack.c.l.b16 %v89
    %v224 = vunpack.c.l.b16 %v90
    %v225 = vunpack.c.l.b16 %v91
    %v226 = vunpack.c.l.b16 %v92
    %v227 = vunpack.c.l.b16 %v93
    %v228 = vunpack.c.l.b16 %v94
    %v229 = vunpack.c.l.b16 %v95
    %v230 = vunpack.c.l.b16 %v96
    %v231 = vunpack.c.l.b16 %v97
    %v232 = vunpack.c.l.b16 %v98
    %v233 = vunpack.c.l.b16 %v99
    %v234 = vunpack.c.l.b16 %v100
    %v235 = vunpack.c.l.b16 %v101
    %v236 = vunpack.c.l.b16 %v102
    %v237 = vunpack.c.l.b16 %v103
    %v238 = vunpack.c.l.b16 %v104
    %v239 = vunpack.c.l.b16 %v105
    %v240 = vunpack.c.l.b16 %v106
    %v241 = vunpack.c.l.b16 %v107
    %v242 = vunpack.c.l.b16 %v108
    %v243 = vunpack.c.l.b16 %v109
    %v244 = vunpack.c.l.b16 %v110
    %v245 = vunpack.c.l.b16 %v111
    %v246 = vunpack.c.l.b16 %v112
    %v247 = vunpack.c.l.b16 %v113
    %v248 = vunpack.c.l.b16 %v114
    %v249 = vunpack.c.l.b16 %v115
    %v250 = vunpack.c.l.b16 %v116
    %v251 = vunpack.c.l.b16 %v117
    %v252 = vunpack.c.l.b16 %v118
    %v253 = vunpack.c.l.b16 %v119
    %v254 = vunpack.c.l.b16 %v120
    %v255 = vpack.c.b16 %v192, %v191
    %v256 = vpack.c.b16 %v194, %v193
    %v257 = vpack.c.b16 %v196, %v195
    %v258 = vpack.c.b16 %v198, %v197
    %v259 = vpack.c.b16 %v200, %v199
    %v260 = vpack.c.b16 %v202, %v201
    %v261 = vpack.c.b16 %v204, %v203
    %v262 = vpack.c.b16 %v206, %v205
    %v263 = vpack.c.b16 %v208, %v207
    %v264 = vpack.c.b16 %v210, %v209
    %v265 = vpack.c.b16 %v212, %v211
    %v266 = vpack.c.b16 %v214, %v213
    %v267 = vpack.c.b16 %v216, %v215
    %v268 = vpack.c.b16 %v218, %v217
    %v269 = vpack.c.b16 %v220, %v219
    %v270 = vpack.c.b16 %v222, %v221
    %v271 = vpack.c.b16 %v224, %v223
    %v272 = vpack.c.b16 %v226, %v225
    %v273 = vpack.c.b16 %v228, %v227
    %v274 = vpack.c.b16 %v230, %v229
    %v275 = vpack.c.b16 %v232, %v231
    %v276 = vpack.c.b16 %v234, %v233
    %v277 = vpack.c.b16 %v236, %v235
    %v278 = vpack.c.b16 %v238, %v237
    %v279 = vpack.c.b16 %v240, %v239
    %v280 = vpack.c.b16 %v242, %v241
    %v281 = vpack.c.b16 %v244, %v243
    %v282 = vpack.c.b16 %v246, %v245
    %v283 = vpack.c.b16 %v248, %v247
    %v284 = vpack.c.b16 %v250, %v249
    %v285 = vpack.c.b16 %v252, %v251
    %v286 = vpack.c.b16 %v254, %v253
    %v289 = vunpack.c.l.b16 %v121
    %v290 = vunpack.c.l.b16 %v122
    %v291 = vpack.c.b16 %v290, %v289
    %vm293 = vcmask 130048
    %v295 = vsel %vm293, %v255, 0
    %v298 = vsel %vm293, %v256, 0
    %v301 = vsel %vm293, %v257, 0
    %v304 = vsel %vm293, %v258, 0
    %v307 = vsel %vm293, %v259, 0
    %v310 = vsel %vm293, %v260, 0
    %v313 = vsel %vm293, %v261, 0
    %v316 = vsel %vm293, %v262, 0
    %v319 = vsel %vm293, %v263, 0
    %v322 = vsel %vm293, %v264, 0
    %v325 = vsel %vm293, %v265, 0
    %v328 = vsel %vm293, %v266, 0
    %v331 = vsel %vm293, %v267, 0
    %v334 = vsel %vm293, %v268, 0
    %v337 = vsel %vm293, %v269, 0
    %v340 = vsel %vm293, %v270, 0
    %v343 = vsel %vm293, %v271, 0
    %v346 = vsel %vm293, %v272, 0
    %v349 = vsel %vm293, %v273, 0
    %v352 = vsel %vm293, %v274, 0
    %v355 = vsel %vm293, %v275, 0
    %v358 = vsel %vm293, %v276, 0
    %v361 = vsel %vm293, %v277, 0
    %v364 = vsel %vm293, %v278, 0
    %v367 = vsel %vm293, %v279, 0
    %v370 = vsel %vm293, %v280, 0
    %v373 = vsel %vm293, %v281, 0
    %v376 = vsel %vm293, %v282, 0
    %v379 = vsel %vm293, %v283, 0
    %v382 = vsel %vm293, %v284, 0
    %v385 = vsel %vm293, %v285, 0
    %v388 = vsel %vm293, %v286, 0
    %390 = vmatprep.subr.bf16.mxu0 0
    %391 = vmatpush1.bf16.msra.mxu0 0
    %392 = vmatprep.subr.bf16.mxu0 0
    %393 = vmatpush1.bf16.msra.mxu0 0
    %394 = vmatprep.subr.bf16.mxu0 0
    %395 = vmatpush1.bf16.msra.mxu0 0
    %396 = vmatprep.subr.bf16.mxu0 0
    %397 = vmatpush1.bf16.msra.mxu0 0
    %398 = vmatprep.subr.bf16.mxu0 0
    %399 = vmatpush1.bf16.msra.mxu0 0
    %400 = vmatprep.subr.bf16.mxu0 0
    %401 = vmatpush1.bf16.msra.mxu0 0
    %402 = vmatprep.subr.bf16.mxu0 0
    %403 = vmatpush1.bf16.msra.mxu0 0
    %404 = vmatprep.subr.bf16.mxu0 0
    %405 = vmatpush1.bf16.msra.mxu0 %v291
    %406 = vmatprep.subr.bf16.mxu0 0
    %407 = vmatpush2.bf16.msra.mxu0 0
    %408 = vmatprep.subr.bf16.mxu0 0
    %409 = vmatpush2.bf16.msra.mxu0 0
    %410 = vmatprep.subr.bf16.mxu0 0
    %411 = vmatpush2.bf16.msra.mxu0 0
    %412 = vmatprep.subr.bf16.mxu0 0
    %413 = vmatpush2.bf16.msra.mxu0 0
    %414 = vmatprep.subr.bf16.mxu0 0
    %415 = vmatpush2.bf16.msra.mxu0 0
    %416 = vmatprep.subr.bf16.mxu0 0
    %417 = vmatpush2.bf16.msra.mxu0 0
    %418 = vmatprep.subr.bf16.mxu0 0
    %419 = vmatpush2.bf16.msra.mxu0 0
    %420 = vmatprep.subr.bf16.mxu0 0
    %421 = vmatpush2.bf16.msra.mxu0 0
    %422 = vmatprep.mubr.bf16.mxu0 0
    %423 = vmatmul.mubr.bf16.gmra.mxu0 %v295
    %v424 = vpop.f32.mrf.mxu0
    %v425 = vadd.f32 %v126, %v424
    %v426 = vpop.f32.mrf.mxu0
    %v427 = vpop.f32.mrf.mxu0
    %v428 = vadd.f32 %v126, %v427
    %v429 = vpop.f32.mrf.mxu0
    %430 = vmatprep.mubr.bf16.mxu0 0
    %431 = vmatmul.mubr.bf16.gmra.mxu0 %v298
    %v432 = vpop.f32.mrf.mxu0
    %v433 = vadd.f32 %v126, %v432
    %v434 = vpop.f32.mrf.mxu0
    %v435 = vpop.f32.mrf.mxu0
    %v436 = vadd.f32 %v126, %v435
    %v437 = vpop.f32.mrf.mxu0
    %438 = vmatprep.mubr.bf16.mxu0 0
    %439 = vmatmul.mubr.bf16.gmra.mxu0 %v301
    %v440 = vpop.f32.mrf.mxu0
    %v441 = vadd.f32 %v126, %v440
    %v442 = vpop.f32.mrf.mxu0
    %v443 = vpop.f32.mrf.mxu0
    %v444 = vadd.f32 %v126, %v443
    %v445 = vpop.f32.mrf.mxu0
    %446 = vmatprep.mubr.bf16.mxu0 0
    %447 = vmatmul.mubr.bf16.gmra.mxu0 %v304
    %v448 = vpop.f32.mrf.mxu0
    %v449 = vadd.f32 %v126, %v448
    %v450 = vpop.f32.mrf.mxu0
    %v451 = vpop.f32.mrf.mxu0
    %v452 = vadd.f32 %v126, %v451
    %v453 = vpop.f32.mrf.mxu0
    %454 = vmatprep.mubr.bf16.mxu0 0
    %455 = vmatmul.mubr.bf16.gmra.mxu0 %v307
    %v456 = vpop.f32.mrf.mxu0
    %v457 = vadd.f32 %v126, %v456
    %v458 = vpop.f32.mrf.mxu0
    %v459 = vpop.f32.mrf.mxu0
    %v460 = vadd.f32 %v126, %v459
    %v461 = vpop.f32.mrf.mxu0
    %462 = vmatprep.mubr.bf16.mxu0 0
    %463 = vmatmul.mubr.bf16.gmra.mxu0 %v310
    %v464 = vpop.f32.mrf.mxu0
    %v465 = vadd.f32 %v126, %v464
    %v466 = vpop.f32.mrf.mxu0
    %v467 = vpop.f32.mrf.mxu0
    %v468 = vadd.f32 %v126, %v467
    %v469 = vpop.f32.mrf.mxu0
    %470 = vmatprep.mubr.bf16.mxu0 0
    %471 = vmatmul.mubr.bf16.gmra.mxu0 %v313
    %v472 = vpop.f32.mrf.mxu0
    %v473 = vadd.f32 %v126, %v472
    %v474 = vpop.f32.mrf.mxu0
    %v475 = vpop.f32.mrf.mxu0
    %v476 = vadd.f32 %v126, %v475
    %v477 = vpop.f32.mrf.mxu0
    %478 = vmatprep.mubr.bf16.mxu0 0
    %479 = vmatmul.mubr.bf16.gmra.mxu0 %v316
    %v480 = vpop.f32.mrf.mxu0
    %v481 = vadd.f32 %v126, %v480
    %v482 = vpop.f32.mrf.mxu0
    %v483 = vpop.f32.mrf.mxu0
    %v484 = vadd.f32 %v126, %v483
    %v485 = vpop.f32.mrf.mxu0
    %486 = vmatprep.mubr.bf16.mxu0 0
    %487 = vmatmul.mubr.bf16.gmra.mxu0 %v319
    %v488 = vpop.f32.mrf.mxu0
    %v489 = vadd.f32 %v126, %v488
    %v490 = vpop.f32.mrf.mxu0
    %v491 = vpop.f32.mrf.mxu0
    %v492 = vadd.f32 %v126, %v491
    %v493 = vpop.f32.mrf.mxu0
    %494 = vmatprep.mubr.bf16.mxu0 0
    %495 = vmatmul.mubr.bf16.gmra.mxu0 %v322
    %v496 = vpop.f32.mrf.mxu0
    %v497 = vadd.f32 %v126, %v496
    %v498 = vpop.f32.mrf.mxu0
    %v499 = vpop.f32.mrf.mxu0
    %v500 = vadd.f32 %v126, %v499
    %v501 = vpop.f32.mrf.mxu0
    %502 = vmatprep.mubr.bf16.mxu0 0
    %503 = vmatmul.mubr.bf16.gmra.mxu0 %v325
    %v504 = vpop.f32.mrf.mxu0
    %v505 = vadd.f32 %v126, %v504
    %v506 = vpop.f32.mrf.mxu0
    %v507 = vpop.f32.mrf.mxu0
    %v508 = vadd.f32 %v126, %v507
    %v509 = vpop.f32.mrf.mxu0
    %510 = vmatprep.mubr.bf16.mxu0 0
    %511 = vmatmul.mubr.bf16.gmra.mxu0 %v328
    %v512 = vpop.f32.mrf.mxu0
    %v513 = vadd.f32 %v126, %v512
    %v514 = vpop.f32.mrf.mxu0
    %v515 = vpop.f32.mrf.mxu0
    %v516 = vadd.f32 %v126, %v515
    %v517 = vpop.f32.mrf.mxu0
    %518 = vmatprep.mubr.bf16.mxu0 0
    %519 = vmatmul.mubr.bf16.gmra.mxu0 %v331
    %v520 = vpop.f32.mrf.mxu0
    %v521 = vadd.f32 %v126, %v520
    %v522 = vpop.f32.mrf.mxu0
    %v523 = vpop.f32.mrf.mxu0
    %v524 = vadd.f32 %v126, %v523
    %v525 = vpop.f32.mrf.mxu0
    %526 = vmatprep.mubr.bf16.mxu0 0
    %527 = vmatmul.mubr.bf16.gmra.mxu0 %v334
    %v528 = vpop.f32.mrf.mxu0
    %v529 = vadd.f32 %v126, %v528
    %v530 = vpop.f32.mrf.mxu0
    %v531 = vpop.f32.mrf.mxu0
    %v532 = vadd.f32 %v126, %v531
    %v533 = vpop.f32.mrf.mxu0
    %534 = vmatprep.mubr.bf16.mxu0 0
    %535 = vmatmul.mubr.bf16.gmra.mxu0 %v337
    %v536 = vpop.f32.mrf.mxu0
    %v537 = vadd.f32 %v126, %v536
    %v538 = vpop.f32.mrf.mxu0
    %v539 = vpop.f32.mrf.mxu0
    %v540 = vadd.f32 %v126, %v539
    %v541 = vpop.f32.mrf.mxu0
    %542 = vmatprep.mubr.bf16.mxu0 0
    %543 = vmatmul.mubr.bf16.gmra.mxu0 %v340
    %v544 = vpop.f32.mrf.mxu0
    %v545 = vadd.f32 %v126, %v544
    %v546 = vpop.f32.mrf.mxu0
    %v547 = vpop.f32.mrf.mxu0
    %v548 = vadd.f32 %v126, %v547
    %v549 = vpop.f32.mrf.mxu0
    %550 = vmatprep.mubr.bf16.mxu0 0
    %551 = vmatmul.mubr.bf16.gmra.mxu0 %v343
    %v552 = vpop.f32.mrf.mxu0
    %v553 = vadd.f32 %v126, %v552
    %v554 = vpop.f32.mrf.mxu0
    %v555 = vpop.f32.mrf.mxu0
    %v556 = vadd.f32 %v126, %v555
    %v557 = vpop.f32.mrf.mxu0
    %558 = vmatprep.mubr.bf16.mxu0 0
    %559 = vmatmul.mubr.bf16.gmra.mxu0 %v346
    %v560 = vpop.f32.mrf.mxu0
    %v561 = vadd.f32 %v126, %v560
    %v562 = vpop.f32.mrf.mxu0
    %v563 = vpop.f32.mrf.mxu0
    %v564 = vadd.f32 %v126, %v563
    %v565 = vpop.f32.mrf.mxu0
    %566 = vmatprep.mubr.bf16.mxu0 0
    %567 = vmatmul.mubr.bf16.gmra.mxu0 %v349
    %v568 = vpop.f32.mrf.mxu0
    %v569 = vadd.f32 %v126, %v568
    %v570 = vpop.f32.mrf.mxu0
    %v571 = vpop.f32.mrf.mxu0
    %v572 = vadd.f32 %v126, %v571
    %v573 = vpop.f32.mrf.mxu0
    %574 = vmatprep.mubr.bf16.mxu0 0
    %575 = vmatmul.mubr.bf16.gmra.mxu0 %v352
    %v576 = vpop.f32.mrf.mxu0
    %v577 = vadd.f32 %v126, %v576
    %v578 = vpop.f32.mrf.mxu0
    %v579 = vpop.f32.mrf.mxu0
    %v580 = vadd.f32 %v126, %v579
    %v581 = vpop.f32.mrf.mxu0
    %582 = vmatprep.mubr.bf16.mxu0 0
    %583 = vmatmul.mubr.bf16.gmra.mxu0 %v355
    %v584 = vpop.f32.mrf.mxu0
    %v585 = vadd.f32 %v126, %v584
    %v586 = vpop.f32.mrf.mxu0
    %v587 = vpop.f32.mrf.mxu0
    %v588 = vadd.f32 %v126, %v587
    %v589 = vpop.f32.mrf.mxu0
    %590 = vmatprep.mubr.bf16.mxu0 0
    %591 = vmatmul.mubr.bf16.gmra.mxu0 %v358
    %v592 = vpop.f32.mrf.mxu0
    %v593 = vadd.f32 %v126, %v592
    %v594 = vpop.f32.mrf.mxu0
    %v595 = vpop.f32.mrf.mxu0
    %v596 = vadd.f32 %v126, %v595
    %v597 = vpop.f32.mrf.mxu0
    %598 = vmatprep.mubr.bf16.mxu0 0
    %599 = vmatmul.mubr.bf16.gmra.mxu0 %v361
    %v600 = vpop.f32.mrf.mxu0
    %v601 = vadd.f32 %v126, %v600
    %v602 = vpop.f32.mrf.mxu0
    %v603 = vpop.f32.mrf.mxu0
    %v604 = vadd.f32 %v126, %v603
    %v605 = vpop.f32.mrf.mxu0
    %606 = vmatprep.mubr.bf16.mxu0 0
    %607 = vmatmul.mubr.bf16.gmra.mxu0 %v364
    %v608 = vpop.f32.mrf.mxu0
    %v609 = vadd.f32 %v126, %v608
    %v610 = vpop.f32.mrf.mxu0
    %v611 = vpop.f32.mrf.mxu0
    %v612 = vadd.f32 %v126, %v611
    %v613 = vpop.f32.mrf.mxu0
    %614 = vmatprep.mubr.bf16.mxu0 0
    %615 = vmatmul.mubr.bf16.gmra.mxu0 %v367
    %v616 = vpop.f32.mrf.mxu0
    %v617 = vadd.f32 %v126, %v616
    %v618 = vpop.f32.mrf.mxu0
    %v619 = vpop.f32.mrf.mxu0
    %v620 = vadd.f32 %v126, %v619
    %v621 = vpop.f32.mrf.mxu0
    %622 = vmatprep.mubr.bf16.mxu0 0
    %623 = vmatmul.mubr.bf16.gmra.mxu0 %v370
    %v624 = vpop.f32.mrf.mxu0
    %v625 = vadd.f32 %v126, %v624
    %v626 = vpop.f32.mrf.mxu0
    %v627 = vpop.f32.mrf.mxu0
    %v628 = vadd.f32 %v126, %v627
    %v629 = vpop.f32.mrf.mxu0
    %630 = vmatprep.mubr.bf16.mxu0 0
    %631 = vmatmul.mubr.bf16.gmra.mxu0 %v373
    %v632 = vpop.f32.mrf.mxu0
    %v633 = vadd.f32 %v126, %v632
    %v634 = vpop.f32.mrf.mxu0
    %v635 = vpop.f32.mrf.mxu0
    %v636 = vadd.f32 %v126, %v635
    %v637 = vpop.f32.mrf.mxu0
    %638 = vmatprep.mubr.bf16.mxu0 0
    %639 = vmatmul.mubr.bf16.gmra.mxu0 %v376
    %v640 = vpop.f32.mrf.mxu0
    %v641 = vadd.f32 %v126, %v640
    %v642 = vpop.f32.mrf.mxu0
    %v643 = vpop.f32.mrf.mxu0
    %v644 = vadd.f32 %v126, %v643
    %v645 = vpop.f32.mrf.mxu0
    %646 = vmatprep.mubr.bf16.mxu0 0
    %647 = vmatmul.mubr.bf16.gmra.mxu0 %v379
    %v648 = vpop.f32.mrf.mxu0
    %v649 = vadd.f32 %v126, %v648
    %v650 = vpop.f32.mrf.mxu0
    %v651 = vpop.f32.mrf.mxu0
    %v652 = vadd.f32 %v126, %v651
    %v653 = vpop.f32.mrf.mxu0
    %654 = vmatprep.mubr.bf16.mxu0 0
    %655 = vmatmul.mubr.bf16.gmra.mxu0 %v382
    %v656 = vpop.f32.mrf.mxu0
    %v657 = vadd.f32 %v126, %v656
    %v658 = vpop.f32.mrf.mxu0
    %v659 = vpop.f32.mrf.mxu0
    %v660 = vadd.f32 %v126, %v659
    %v661 = vpop.f32.mrf.mxu0
    %662 = vmatprep.mubr.bf16.mxu0 0
    %663 = vmatmul.mubr.bf16.gmra.mxu0 %v385
    %v664 = vpop.f32.mrf.mxu0
    %v665 = vadd.f32 %v126, %v664
    %v666 = vpop.f32.mrf.mxu0
    %v667 = vpop.f32.mrf.mxu0
    %v668 = vadd.f32 %v126, %v667
    %v669 = vpop.f32.mrf.mxu0
    %670 = vmatprep.mubr.bf16.mxu0 0
    %671 = vmatmul.mubr.bf16.gmra.mxu0 %v388
    %v672 = vpop.f32.mrf.mxu0
    %v673 = vadd.f32 %v126, %v672
    %v674 = vpop.f32.mrf.mxu0
    %v675 = vpop.f32.mrf.mxu0
    %v676 = vadd.f32 %v126, %v675
    %v677 = vpop.f32.mrf.mxu0
    %678 = vdwg.mxu0
    %vm679 = vcmp.gt.f32.partialorder %v425, 0.0
    %vm680 = vcmp.gt.f32.partialorder %v428, 0.0
    %vm681 = vcmp.gt.f32.partialorder %v433, 0.0
    %vm682 = vcmp.gt.f32.partialorder %v436, 0.0
    %vm683 = vcmp.gt.f32.partialorder %v441, 0.0
    %vm684 = vcmp.gt.f32.partialorder %v444, 0.0
    %vm685 = vcmp.gt.f32.partialorder %v449, 0.0
    %vm686 = vcmp.gt.f32.partialorder %v452, 0.0
    %vm687 = vcmp.gt.f32.partialorder %v457, 0.0
    %vm688 = vcmp.gt.f32.partialorder %v460, 0.0
    %vm689 = vcmp.gt.f32.partialorder %v465, 0.0
    %vm690 = vcmp.gt.f32.partialorder %v468, 0.0
    %vm691 = vcmp.gt.f32.partialorder %v473, 0.0
    %vm692 = vcmp.gt.f32.partialorder %v476, 0.0
    %vm693 = vcmp.gt.f32.partialorder %v481, 0.0
    %vm694 = vcmp.gt.f32.partialorder %v484, 0.0
    %vm695 = vcmp.gt.f32.partialorder %v489, 0.0
    %vm696 = vcmp.gt.f32.partialorder %v492, 0.0
    %vm697 = vcmp.gt.f32.partialorder %v497, 0.0
    %vm698 = vcmp.gt.f32.partialorder %v500, 0.0
    %vm699 = vcmp.gt.f32.partialorder %v505, 0.0
    %vm700 = vcmp.gt.f32.partialorder %v508, 0.0
    %vm701 = vcmp.gt.f32.partialorder %v513, 0.0
    %vm702 = vcmp.gt.f32.partialorder %v516, 0.0
    %vm703 = vcmp.gt.f32.partialorder %v521, 0.0
    %vm704 = vcmp.gt.f32.partialorder %v524, 0.0
    %vm705 = vcmp.gt.f32.partialorder %v529, 0.0
    %vm706 = vcmp.gt.f32.partialorder %v532, 0.0
    %vm707 = vcmp.gt.f32.partialorder %v537, 0.0
    %vm708 = vcmp.gt.f32.partialorder %v540, 0.0
    %vm709 = vcmp.gt.f32.partialorder %v545, 0.0
    %vm710 = vcmp.gt.f32.partialorder %v548, 0.0
    %vm711 = vcmp.gt.f32.partialorder %v553, 0.0
    %vm712 = vcmp.gt.f32.partialorder %v556, 0.0
    %vm713 = vcmp.gt.f32.partialorder %v561, 0.0
    %vm714 = vcmp.gt.f32.partialorder %v564, 0.0
    %vm715 = vcmp.gt.f32.partialorder %v569, 0.0
    %vm716 = vcmp.gt.f32.partialorder %v572, 0.0
    %vm717 = vcmp.gt.f32.partialorder %v577, 0.0
    %vm718 = vcmp.gt.f32.partialorder %v580, 0.0
    %vm719 = vcmp.gt.f32.partialorder %v585, 0.0
    %vm720 = vcmp.gt.f32.partialorder %v588, 0.0
    %vm721 = vcmp.gt.f32.partialorder %v593, 0.0
    %vm722 = vcmp.gt.f32.partialorder %v596, 0.0
    %vm723 = vcmp.gt.f32.partialorder %v601, 0.0
    %vm724 = vcmp.gt.f32.partialorder %v604, 0.0
    %vm725 = vcmp.gt.f32.partialorder %v609, 0.0
    %vm726 = vcmp.gt.f32.partialorder %v612, 0.0
    %vm727 = vcmp.gt.f32.partialorder %v617, 0.0
    %vm728 = vcmp.gt.f32.partialorder %v620, 0.0
    %vm729 = vcmp.gt.f32.partialorder %v625, 0.0
    %vm730 = vcmp.gt.f32.partialorder %v628, 0.0
    %vm731 = vcmp.gt.f32.partialorder %v633, 0.0
    %vm732 = vcmp.gt.f32.partialorder %v636, 0.0
    %vm733 = vcmp.gt.f32.partialorder %v641, 0.0
    %vm734 = vcmp.gt.f32.partialorder %v644, 0.0
    %vm735 = vcmp.gt.f32.partialorder %v649, 0.0
    %vm736 = vcmp.gt.f32.partialorder %v652, 0.0
    %vm737 = vcmp.gt.f32.partialorder %v657, 0.0
    %vm738 = vcmp.gt.f32.partialorder %v660, 0.0
    %vm739 = vcmp.gt.f32.partialorder %v665, 0.0
    %vm740 = vcmp.gt.f32.partialorder %v668, 0.0
    %vm741 = vcmp.gt.f32.partialorder %v673, 0.0
    %vm742 = vcmp.gt.f32.partialorder %v676, 0.0
    %v743 = vlaneseq
    %v744 = vshrl.u32 %v743, 7
    %v745 = vsub.s32 0, %v744
    %v746 = vrot.slane %v54, %v745
    %v747 = vmul.f32 %v746, %v425
    %v748 = vmul.f32 %v746, %v428
    %v749 = vmul.f32 %v746, %v433
    %v750 = vmul.f32 %v746, %v436
    %v751 = vmul.f32 %v746, %v441
    %v752 = vmul.f32 %v746, %v444
    %v753 = vmul.f32 %v746, %v449
    %v754 = vmul.f32 %v746, %v452
    %v755 = vmul.f32 %v746, %v457
    %v756 = vmul.f32 %v746, %v460
    %v757 = vmul.f32 %v746, %v465
    %v758 = vmul.f32 %v746, %v468
    %v759 = vmul.f32 %v746, %v473
    %v760 = vmul.f32 %v746, %v476
    %v761 = vmul.f32 %v746, %v481
    %v762 = vmul.f32 %v746, %v484
    %v763 = vmul.f32 %v746, %v489
    %v764 = vmul.f32 %v746, %v492
    %v765 = vmul.f32 %v746, %v497
    %v766 = vmul.f32 %v746, %v500
    %v767 = vmul.f32 %v746, %v505
    %v768 = vmul.f32 %v746, %v508
    %v769 = vmul.f32 %v746, %v513
    %v770 = vmul.f32 %v746, %v516
    %v771 = vmul.f32 %v746, %v521
    %v772 = vmul.f32 %v746, %v524
    %v773 = vmul.f32 %v746, %v529
    %v774 = vmul.f32 %v746, %v532
    %v775 = vmul.f32 %v746, %v537
    %v776 = vmul.f32 %v746, %v540
    %v777 = vmul.f32 %v746, %v545
    %v778 = vmul.f32 %v746, %v548
    %v779 = vmul.f32 %v746, %v553
    %v780 = vmul.f32 %v746, %v556
    %v781 = vmul.f32 %v746, %v561
    %v782 = vmul.f32 %v746, %v564
    %v783 = vmul.f32 %v746, %v569
    %v784 = vmul.f32 %v746, %v572
    %v785 = vmul.f32 %v746, %v577
    %v786 = vmul.f32 %v746, %v580
    %v787 = vmul.f32 %v746, %v585
    %v788 = vmul.f32 %v746, %v588
    %v789 = vmul.f32 %v746, %v593
    %v790 = vmul.f32 %v746, %v596
    %v791 = vmul.f32 %v746, %v601
    %v792 = vmul.f32 %v746, %v604
    %v793 = vmul.f32 %v746, %v609
    %v794 = vmul.f32 %v746, %v612
    %v795 = vmul.f32 %v746, %v617
    %v796 = vmul.f32 %v746, %v620
    %v797 = vmul.f32 %v746, %v625
    %v798 = vmul.f32 %v746, %v628
    %v799 = vmul.f32 %v746, %v633
    %v800 = vmul.f32 %v746, %v636
    %v801 = vmul.f32 %v746, %v641
    %v802 = vmul.f32 %v746, %v644
    %v803 = vmul.f32 %v746, %v649
    %v804 = vmul.f32 %v746, %v652
    %v805 = vmul.f32 %v746, %v657
    %v806 = vmul.f32 %v746, %v660
    %v807 = vmul.f32 %v746, %v665
    %v808 = vmul.f32 %v746, %v668
    %v809 = vmul.f32 %v746, %v673
    %v810 = vmul.f32 %v746, %v676
    %v811 = vsel %vm679, %v425, %v747
    %v812 = vsel %vm680, %v428, %v748
    %v813 = vsel %vm681, %v433, %v749
    %v814 = vsel %vm682, %v436, %v750
    %v815 = vsel %vm683, %v441, %v751
    %v816 = vsel %vm684, %v444, %v752
    %v817 = vsel %vm685, %v449, %v753
    %v818 = vsel %vm686, %v452, %v754
    %v819 = vsel %vm687, %v457, %v755
    %v820 = vsel %vm688, %v460, %v756
    %v821 = vsel %vm689, %v465, %v757
    %v822 = vsel %vm690, %v468, %v758
    %v823 = vsel %vm691, %v473, %v759
    %v824 = vsel %vm692, %v476, %v760
    %v825 = vsel %vm693, %v481, %v761
    %v826 = vsel %vm694, %v484, %v762
    %v827 = vsel %vm695, %v489, %v763
    %v828 = vsel %vm696, %v492, %v764
    %v829 = vsel %vm697, %v497, %v765
    %v830 = vsel %vm698, %v500, %v766
    %v831 = vsel %vm699, %v505, %v767
    %v832 = vsel %vm700, %v508, %v768
    %v833 = vsel %vm701, %v513, %v769
    %v834 = vsel %vm702, %v516, %v770
    %v835 = vsel %vm703, %v521, %v771
    %v836 = vsel %vm704, %v524, %v772
    %v837 = vsel %vm705, %v529, %v773
    %v838 = vsel %vm706, %v532, %v774
    %v839 = vsel %vm707, %v537, %v775
    %v840 = vsel %vm708, %v540, %v776
    %v841 = vsel %vm709, %v545, %v777
    %v842 = vsel %vm710, %v548, %v778
    %v843 = vsel %vm711, %v553, %v779
    %v844 = vsel %vm712, %v556, %v780
    %v845 = vsel %vm713, %v561, %v781
    %v846 = vsel %vm714, %v564, %v782
    %v847 = vsel %vm715, %v569, %v783
    %v848 = vsel %vm716, %v572, %v784
    %v849 = vsel %vm717, %v577, %v785
    %v850 = vsel %vm718, %v580, %v786
    %v851 = vsel %vm719, %v585, %v787
    %v852 = vsel %vm720, %v588, %v788
    %v853 = vsel %vm721, %v593, %v789
    %v854 = vsel %vm722, %v596, %v790
    %v855 = vsel %vm723, %v601, %v791
    %v856 = vsel %vm724, %v604, %v792
    %v857 = vsel %vm725, %v609, %v793
    %v858 = vsel %vm726, %v612, %v794
    %v859 = vsel %vm727, %v617, %v795
    %v860 = vsel %vm728, %v620, %v796
    %v861 = vsel %vm729, %v625, %v797
    %v862 = vsel %vm730, %v628, %v798
    %v863 = vsel %vm731, %v633, %v799
    %v864 = vsel %vm732, %v636, %v800
    %v865 = vsel %vm733, %v641, %v801
    %v866 = vsel %vm734, %v644, %v802
    %v867 = vsel %vm735, %v649, %v803
    %v868 = vsel %vm736, %v652, %v804
    %v869 = vsel %vm737, %v657, %v805
    %v870 = vsel %vm738, %v660, %v806
    %v871 = vsel %vm739, %v665, %v807
    %v872 = vsel %vm740, %v668, %v808
    %v873 = vsel %vm741, %v673, %v809
    %v874 = vsel %vm742, %v676, %v810
    %vm875 = vcmask 261120
    %876 = vst.msk [vmem:[#allocation2] sm:$0xff] %vm875, 0.0
    %877 = vst.msk [vmem:[#allocation2 + $0x8] sm:$0xff] %vm875, 0.0
    %vm878 = vcmask 254976
    %879 = vst.msk [vmem:[#allocation2 + $0x10] sm:$0x3] %vm878, 0.0
    %880 = vst.msk [vmem:[#allocation2 + $0x1b0] sm:$0xff] %vm875, 0.0
    %881 = vst.msk [vmem:[#allocation2 + $0x1b8] sm:$0xff] %vm875, 0.0
    %882 = vst.msk [vmem:[#allocation2 + $0x1c0] sm:$0x3] %vm878, 0.0
    %vm883 = vcmask 253952
    %884 = vst.msk [vmem:[#allocation2] sm:$0x1] %vm883, 0.0
    %885 = vst.msk [vmem:[#allocation2 + $0x18] sm:$0x1] %vm883, 0.0
    %886 = vst.msk [vmem:[#allocation2 + $0x30] sm:$0x1] %vm883, 0.0
    %887 = vst.msk [vmem:[#allocation2 + $0x48] sm:$0x1] %vm883, 0.0
    %888 = vst.msk [vmem:[#allocation2 + $0x60] sm:$0x1] %vm883, 0.0
    %889 = vst.msk [vmem:[#allocation2 + $0x78] sm:$0x1] %vm883, 0.0
    %890 = vst.msk [vmem:[#allocation2 + $0x90] sm:$0x1] %vm883, 0.0
    %891 = vst.msk [vmem:[#allocation2 + $0xa8] sm:$0x1] %vm883, 0.0
    %892 = vst.msk [vmem:[#allocation2 + $0xc0] sm:$0x1] %vm883, 0.0
    %893 = vst.msk [vmem:[#allocation2 + $0xd8] sm:$0x1] %vm883, 0.0
    %894 = vst.msk [vmem:[#allocation2 + $0xf0] sm:$0x1] %vm883, 0.0
    %895 = vst.msk [vmem:[#allocation2 + $0x108] sm:$0x1] %vm883, 0.0
    %896 = vst.msk [vmem:[#allocation2 + $0x120] sm:$0x1] %vm883, 0.0
    %897 = vst.msk [vmem:[#allocation2 + $0x138] sm:$0x1] %vm883, 0.0
    %898 = vst.msk [vmem:[#allocation2 + $0x150] sm:$0x1] %vm883, 0.0
    %899 = vst.msk [vmem:[#allocation2 + $0x168] sm:$0x1] %vm883, 0.0
    %900 = vst.msk [vmem:[#allocation2 + $0x180] sm:$0x1] %vm883, 0.0
    %901 = vst.msk [vmem:[#allocation2 + $0x198] sm:$0x1] %vm883, 0.0
    %902 = vst.msk [vmem:[#allocation2 + $0x1b0] sm:$0x1] %vm883, 0.0
    %903 = vst.msk [vmem:[#allocation2 + $0x1c8] sm:$0x1] %vm883, 0.0
    %904 = vst.msk [vmem:[#allocation2 + $0x1e0] sm:$0x1] %vm883, 0.0
    %905 = vst.msk [vmem:[#allocation2 + $0x1f8] sm:$0x1] %vm883, 0.0
    %906 = vst.msk [vmem:[#allocation2 + $0x210] sm:$0x1] %vm883, 0.0
    %907 = vst.msk [vmem:[#allocation2 + $0x228] sm:$0x1] %vm883, 0.0
    %908 = vst.msk [vmem:[#allocation2 + $0x240] sm:$0x1] %vm883, 0.0
    %909 = vst.msk [vmem:[#allocation2 + $0x258] sm:$0x1] %vm883, 0.0
    %910 = vst.msk [vmem:[#allocation2 + $0x270] sm:$0x1] %vm883, 0.0
    %911 = vst.msk [vmem:[#allocation2 + $0x288] sm:$0x1] %vm883, 0.0
    %912 = vst.msk [vmem:[#allocation2 + $0x2a0] sm:$0x1] %vm883, 0.0
    %913 = vst.msk [vmem:[#allocation2 + $0x2b8] sm:$0x1] %vm883, 0.0
    %914 = vst.msk [vmem:[#allocation2 + $0x2d0] sm:$0x1] %vm883, 0.0
    %915 = vst.msk [vmem:[#allocation2 + $0x2e8] sm:$0x1] %vm883, 0.0
    %916 = vst.msk [vmem:[#allocation2 + $0x300] sm:$0x1] %vm883, 0.0
    %917 = vst.msk [vmem:[#allocation2 + $0x318] sm:$0x1] %vm883, 0.0
    %918 = vst.msk [vmem:[#allocation2 + $0x330] sm:$0x1] %vm883, 0.0
    %919 = vst.msk [vmem:[#allocation2 + $0x348] sm:$0x1] %vm883, 0.0
    %s920 = scalar_lea.vmem [#allocation2], 24
    %921 = vst.msk [vmem:[%s920 + $0x1] sm:$0xff] %vm875, %v811
    %922 = vst.msk [vmem:[%s920 + $0x9] sm:$0xff] %vm875, %v812
    %923 = vst.msk [vmem:[%s920 + $0x19] sm:$0xff] %vm875, %v813
    %924 = vst.msk [vmem:[%s920 + $0x21] sm:$0xff] %vm875, %v814
    %925 = vst.msk [vmem:[%s920 + $0x31] sm:$0xff] %vm875, %v815
    %926 = vst.msk [vmem:[%s920 + $0x39] sm:$0xff] %vm875, %v816
    %927 = vst.msk [vmem:[%s920 + $0x49] sm:$0xff] %vm875, %v817
    %928 = vst.msk [vmem:[%s920 + $0x51] sm:$0xff] %vm875, %v818
    %929 = vst.msk [vmem:[%s920 + $0x61] sm:$0xff] %vm875, %v819
    %930 = vst.msk [vmem:[%s920 + $0x69] sm:$0xff] %vm875, %v820
    %931 = vst.msk [vmem:[%s920 + $0x79] sm:$0xff] %vm875, %v821
    %932 = vst.msk [vmem:[%s920 + $0x81] sm:$0xff] %vm875, %v822
    %933 = vst.msk [vmem:[%s920 + $0x91] sm:$0xff] %vm875, %v823
    %934 = vst.msk [vmem:[%s920 + $0x99] sm:$0xff] %vm875, %v824
    %935 = vst.msk [vmem:[%s920 + $0xa9] sm:$0xff] %vm875, %v825
    %936 = vst.msk [vmem:[%s920 + $0xb1] sm:$0xff] %vm875, %v826
    %937 = vst.msk [vmem:[%s920 + $0xc1] sm:$0xff] %vm875, %v827
    %938 = vst.msk [vmem:[%s920 + $0xc9] sm:$0xff] %vm875, %v828
    %939 = vst.msk [vmem:[%s920 + $0xd9] sm:$0xff] %vm875, %v829
    %940 = vst.msk [vmem:[%s920 + $0xe1] sm:$0xff] %vm875, %v830
    %941 = vst.msk [vmem:[%s920 + $0xf1] sm:$0xff] %vm875, %v831
    %942 = vst.msk [vmem:[%s920 + $0xf9] sm:$0xff] %vm875, %v832
    %943 = vst.msk [vmem:[%s920 + $0x109] sm:$0xff] %vm875, %v833
    %944 = vst.msk [vmem:[%s920 + $0x111] sm:$0xff] %vm875, %v834
    %945 = vst.msk [vmem:[%s920 + $0x121] sm:$0xff] %vm875, %v835
    %946 = vst.msk [vmem:[%s920 + $0x129] sm:$0xff] %vm875, %v836
    %947 = vst.msk [vmem:[%s920 + $0x139] sm:$0xff] %vm875, %v837
    %948 = vst.msk [vmem:[%s920 + $0x141] sm:$0xff] %vm875, %v838
    %949 = vst.msk [vmem:[%s920 + $0x151] sm:$0xff] %vm875, %v839
    %950 = vst.msk [vmem:[%s920 + $0x159] sm:$0xff] %vm875, %v840
    %951 = vst.msk [vmem:[%s920 + $0x169] sm:$0xff] %vm875, %v841
    %952 = vst.msk [vmem:[%s920 + $0x171] sm:$0xff] %vm875, %v842
    %953 = vst.msk [vmem:[%s920 + $0x1b1] sm:$0xff] %vm875, %v843
    %954 = vst.msk [vmem:[%s920 + $0x1b9] sm:$0xff] %vm875, %v844
    %955 = vst.msk [vmem:[%s920 + $0x1c9] sm:$0xff] %vm875, %v845
    %956 = vst.msk [vmem:[%s920 + $0x1d1] sm:$0xff] %vm875, %v846
    %957 = vst.msk [vmem:[%s920 + $0x1e1] sm:$0xff] %vm875, %v847
    %958 = vst.msk [vmem:[%s920 + $0x1e9] sm:$0xff] %vm875, %v848
    %959 = vst.msk [vmem:[%s920 + $0x1f9] sm:$0xff] %vm875, %v849
    %960 = vst.msk [vmem:[%s920 + $0x201] sm:$0xff] %vm875, %v850
    %961 = vst.msk [vmem:[%s920 + $0x211] sm:$0xff] %vm875, %v851
    %962 = vst.msk [vmem:[%s920 + $0x219] sm:$0xff] %vm875, %v852
    %963 = vst.msk [vmem:[%s920 + $0x229] sm:$0xff] %vm875, %v853
    %964 = vst.msk [vmem:[%s920 + $0x231] sm:$0xff] %vm875, %v854
    %965 = vst.msk [vmem:[%s920 + $0x241] sm:$0xff] %vm875, %v855
    %966 = vst.msk [vmem:[%s920 + $0x249] sm:$0xff] %vm875, %v856
    %967 = vst.msk [vmem:[%s920 + $0x259] sm:$0xff] %vm875, %v857
    %968 = vst.msk [vmem:[%s920 + $0x261] sm:$0xff] %vm875, %v858
    %969 = vst.msk [vmem:[%s920 + $0x271] sm:$0xff] %vm875, %v859
    %970 = vst.msk [vmem:[%s920 + $0x279] sm:$0xff] %vm875, %v860
    %971 = vst.msk [vmem:[%s920 + $0x289] sm:$0xff] %vm875, %v861
    %972 = vst.msk [vmem:[%s920 + $0x291] sm:$0xff] %vm875, %v862
    %973 = vst.msk [vmem:[%s920 + $0x2a1] sm:$0xff] %vm875, %v863
    %974 = vst.msk [vmem:[%s920 + $0x2a9] sm:$0xff] %vm875, %v864
    %975 = vst.msk [vmem:[%s920 + $0x2b9] sm:$0xff] %vm875, %v865
    %976 = vst.msk [vmem:[%s920 + $0x2c1] sm:$0xff] %vm875, %v866
    %977 = vst.msk [vmem:[%s920 + $0x2d1] sm:$0xff] %vm875, %v867
    %978 = vst.msk [vmem:[%s920 + $0x2d9] sm:$0xff] %vm875, %v868
    %979 = vst.msk [vmem:[%s920 + $0x2e9] sm:$0xff] %vm875, %v869
    %980 = vst.msk [vmem:[%s920 + $0x2f1] sm:$0xff] %vm875, %v870
    %981 = vst.msk [vmem:[%s920 + $0x301] sm:$0xff] %vm875, %v871
    %982 = vst.msk [vmem:[%s920 + $0x309] sm:$0xff] %vm875, %v872
    %983 = vst.msk [vmem:[%s920 + $0x319] sm:$0xff] %vm875, %v873
    %984 = vst.msk [vmem:[%s920 + $0x321] sm:$0xff] %vm875, %v874
    %v985 = vld [vmem:[#allocation2] ss:$2 sm:$0xff]
    %s986 = scalar_lea.vmem [#allocation2], 16
    %v987 = vld [vmem:[%s986] ss:$2 sm:$0x1]
    %s988 = scalar_lea.vmem [#allocation2], 24
    %v989 = vld [vmem:[%s988] ss:$2 sm:$0xff]
    %s990 = scalar_lea.vmem [#allocation2], 40
    %v991 = vld [vmem:[%s990] ss:$2 sm:$0x1]
    %s992 = scalar_lea.vmem [#allocation2], 48
    %v993 = vld [vmem:[%s992] ss:$2 sm:$0xff]
    %s994 = scalar_lea.vmem [#allocation2], 64
    %v995 = vld [vmem:[%s994] ss:$2 sm:$0x1]
    %s996 = scalar_lea.vmem [#allocation2], 72
    %v997 = vld [vmem:[%s996] ss:$2 sm:$0xff]
    %s998 = scalar_lea.vmem [#allocation2], 88
    %v999 = vld [vmem:[%s998] ss:$2 sm:$0x1]
    %s1000 = scalar_lea.vmem [#allocation2], 96
    %v1001 = vld [vmem:[%s1000] ss:$2 sm:$0xff]
    %s1002 = scalar_lea.vmem [#allocation2], 112
    %v1003 = vld [vmem:[%s1002] ss:$2 sm:$0x1]
    %s1004 = scalar_lea.vmem [#allocation2], 120
    %v1005 = vld [vmem:[%s1004] ss:$2 sm:$0xff]
    %s1006 = scalar_lea.vmem [#allocation2], 136
    %v1007 = vld [vmem:[%s1006] ss:$2 sm:$0x1]
    %s1008 = scalar_lea.vmem [#allocation2], 144
    %v1009 = vld [vmem:[%s1008] ss:$2 sm:$0xff]
    %s1010 = scalar_lea.vmem [#allocation2], 160
    %v1011 = vld [vmem:[%s1010] ss:$2 sm:$0x1]
    %s1012 = scalar_lea.vmem [#allocation2], 168
    %v1013 = vld [vmem:[%s1012] ss:$2 sm:$0xff]
    %s1014 = scalar_lea.vmem [#allocation2], 184
    %v1015 = vld [vmem:[%s1014] ss:$2 sm:$0x1]
    %s1016 = scalar_lea.vmem [#allocation2], 192
    %v1017 = vld [vmem:[%s1016] ss:$2 sm:$0xff]
    %s1018 = scalar_lea.vmem [#allocation2], 208
    %v1019 = vld [vmem:[%s1018] ss:$2 sm:$0x1]
    %s1020 = scalar_lea.vmem [#allocation2], 216
    %v1021 = vld [vmem:[%s1020] ss:$2 sm:$0xff]
    %s1022 = scalar_lea.vmem [#allocation2], 232
    %v1023 = vld [vmem:[%s1022] ss:$2 sm:$0x1]
    %s1024 = scalar_lea.vmem [#allocation2], 240
    %v1025 = vld [vmem:[%s1024] ss:$2 sm:$0xff]
    %s1026 = scalar_lea.vmem [#allocation2], 256
    %v1027 = vld [vmem:[%s1026] ss:$2 sm:$0x1]
    %s1028 = scalar_lea.vmem [#allocation2], 264
    %v1029 = vld [vmem:[%s1028] ss:$2 sm:$0xff]
    %s1030 = scalar_lea.vmem [#allocation2], 280
    %v1031 = vld [vmem:[%s1030] ss:$2 sm:$0x1]
    %s1032 = scalar_lea.vmem [#allocation2], 288
    %v1033 = vld [vmem:[%s1032] ss:$2 sm:$0xff]
    %s1034 = scalar_lea.vmem [#allocation2], 304
    %v1035 = vld [vmem:[%s1034] ss:$2 sm:$0x1]
    %s1036 = scalar_lea.vmem [#allocation2], 312
    %v1037 = vld [vmem:[%s1036] ss:$2 sm:$0xff]
    %s1038 = scalar_lea.vmem [#allocation2], 328
    %v1039 = vld [vmem:[%s1038] ss:$2 sm:$0x1]
    %s1040 = scalar_lea.vmem [#allocation2], 336
    %v1041 = vld [vmem:[%s1040] ss:$2 sm:$0xff]
    %s1042 = scalar_lea.vmem [#allocation2], 352
    %v1043 = vld [vmem:[%s1042] ss:$2 sm:$0x1]
    %s1044 = scalar_lea.vmem [#allocation2], 360
    %v1045 = vld [vmem:[%s1044] ss:$2 sm:$0xff]
    %s1046 = scalar_lea.vmem [#allocation2], 376
    %v1047 = vld [vmem:[%s1046] ss:$2 sm:$0x1]
    %s1048 = scalar_lea.vmem [#allocation2], 384
    %v1049 = vld [vmem:[%s1048] ss:$2 sm:$0xff]
    %s1050 = scalar_lea.vmem [#allocation2], 400
    %v1051 = vld [vmem:[%s1050] ss:$2 sm:$0x1]
    %s1052 = scalar_lea.vmem [#allocation2], 408
    %v1053 = vld [vmem:[%s1052] ss:$2 sm:$0xff]
    %s1054 = scalar_lea.vmem [#allocation2], 424
    %v1055 = vld [vmem:[%s1054] ss:$2 sm:$0x1]
    %s1056 = scalar_lea.vmem [#allocation2], 432
    %v1057 = vld [vmem:[%s1056] ss:$2 sm:$0xff]
    %s1058 = scalar_lea.vmem [#allocation2], 448
    %v1059 = vld [vmem:[%s1058] ss:$2 sm:$0x1]
    %s1060 = scalar_lea.vmem [#allocation2], 456
    %v1061 = vld [vmem:[%s1060] ss:$2 sm:$0xff]
    %s1062 = scalar_lea.vmem [#allocation2], 472
    %v1063 = vld [vmem:[%s1062] ss:$2 sm:$0x1]
    %s1064 = scalar_lea.vmem [#allocation2], 480
    %v1065 = vld [vmem:[%s1064] ss:$2 sm:$0xff]
    %s1066 = scalar_lea.vmem [#allocation2], 496
    %v1067 = vld [vmem:[%s1066] ss:$2 sm:$0x1]
    %s1068 = scalar_lea.vmem [#allocation2], 504
    %v1069 = vld [vmem:[%s1068] ss:$2 sm:$0xff]
    %s1070 = scalar_lea.vmem [#allocation2], 520
    %v1071 = vld [vmem:[%s1070] ss:$2 sm:$0x1]
    %s1072 = scalar_lea.vmem [#allocation2], 528
    %v1073 = vld [vmem:[%s1072] ss:$2 sm:$0xff]
    %s1074 = scalar_lea.vmem [#allocation2], 544
    %v1075 = vld [vmem:[%s1074] ss:$2 sm:$0x1]
    %s1076 = scalar_lea.vmem [#allocation2], 552
    %v1077 = vld [vmem:[%s1076] ss:$2 sm:$0xff]
    %s1078 = scalar_lea.vmem [#allocation2], 568
    %v1079 = vld [vmem:[%s1078] ss:$2 sm:$0x1]
    %s1080 = scalar_lea.vmem [#allocation2], 576
    %v1081 = vld [vmem:[%s1080] ss:$2 sm:$0xff]
    %s1082 = scalar_lea.vmem [#allocation2], 592
    %v1083 = vld [vmem:[%s1082] ss:$2 sm:$0x1]
    %s1084 = scalar_lea.vmem [#allocation2], 600
    %v1085 = vld [vmem:[%s1084] ss:$2 sm:$0xff]
    %s1086 = scalar_lea.vmem [#allocation2], 616
    %v1087 = vld [vmem:[%s1086] ss:$2 sm:$0x1]
    %s1088 = scalar_lea.vmem [#allocation2], 624
    %v1089 = vld [vmem:[%s1088] ss:$2 sm:$0xff]
    %s1090 = scalar_lea.vmem [#allocation2], 640
    %v1091 = vld [vmem:[%s1090] ss:$2 sm:$0x1]
    %s1092 = scalar_lea.vmem [#allocation2], 648
    %v1093 = vld [vmem:[%s1092] ss:$2 sm:$0xff]
    %s1094 = scalar_lea.vmem [#allocation2], 664
    %v1095 = vld [vmem:[%s1094] ss:$2 sm:$0x1]
    %s1096 = scalar_lea.vmem [#allocation2], 672
    %v1097 = vld [vmem:[%s1096] ss:$2 sm:$0xff]
    %s1098 = scalar_lea.vmem [#allocation2], 688
    %v1099 = vld [vmem:[%s1098] ss:$2 sm:$0x1]
    %s1100 = scalar_lea.vmem [#allocation2], 696
    %v1101 = vld [vmem:[%s1100] ss:$2 sm:$0xff]
    %s1102 = scalar_lea.vmem [#allocation2], 712
    %v1103 = vld [vmem:[%s1102] ss:$2 sm:$0x1]
    %s1104 = scalar_lea.vmem [#allocation2], 720
    %v1105 = vld [vmem:[%s1104] ss:$2 sm:$0xff]
    %s1106 = scalar_lea.vmem [#allocation2], 736
    %v1107 = vld [vmem:[%s1106] ss:$2 sm:$0x1]
    %s1108 = scalar_lea.vmem [#allocation2], 744
    %v1109 = vld [vmem:[%s1108] ss:$2 sm:$0xff]
    %s1110 = scalar_lea.vmem [#allocation2], 760
    %v1111 = vld [vmem:[%s1110] ss:$2 sm:$0x1]
    %s1112 = scalar_lea.vmem [#allocation2], 768
    %v1113 = vld [vmem:[%s1112] ss:$2 sm:$0xff]
    %s1114 = scalar_lea.vmem [#allocation2], 784
    %v1115 = vld [vmem:[%s1114] ss:$2 sm:$0x1]
    %s1116 = scalar_lea.vmem [#allocation2], 792
    %v1117 = vld [vmem:[%s1116] ss:$2 sm:$0xff]
    %s1118 = scalar_lea.vmem [#allocation2], 808
    %v1119 = vld [vmem:[%s1118] ss:$2 sm:$0x1]
    %s1120 = scalar_lea.vmem [#allocation2], 816
    %v1121 = vld [vmem:[%s1120] ss:$2 sm:$0xff]
    %s1122 = scalar_lea.vmem [#allocation2], 832
    %v1123 = vld [vmem:[%s1122] ss:$2 sm:$0x1]
    %s1124 = scalar_lea.vmem [#allocation2], 840
    %v1125 = vld [vmem:[%s1124] ss:$2 sm:$0xff]
    %s1126 = scalar_lea.vmem [#allocation2], 856
    %v1127 = vld [vmem:[%s1126] ss:$2 sm:$0x1]
    %1128 = vst.msk [vmem:[#allocation3] sm:$0xff] %vm875, %v985
    %1129 = vst.msk [vmem:[#allocation3 + $0x8] sm:$0x1] %vm883, %v987
    %1130 = vst.msk [vmem:[#allocation3 + $0x10] sm:$0xff] %vm875, %v989
    %1131 = vst.msk [vmem:[#allocation3 + $0x18] sm:$0x1] %vm883, %v991
    %1132 = vst.msk [vmem:[#allocation3 + $0x20] sm:$0xff] %vm875, %v993
    %1133 = vst.msk [vmem:[#allocation3 + $0x28] sm:$0x1] %vm883, %v995
    %1134 = vst.msk [vmem:[#allocation3 + $0x30] sm:$0xff] %vm875, %v997
    %1135 = vst.msk [vmem:[#allocation3 + $0x38] sm:$0x1] %vm883, %v999
    %1136 = vst.msk [vmem:[#allocation3 + $0x40] sm:$0xff] %vm875, %v1001
    %1137 = vst.msk [vmem:[#allocation3 + $0x48] sm:$0x1] %vm883, %v1003
    %1138 = vst.msk [vmem:[#allocation3 + $0x50] sm:$0xff] %vm875, %v1005
    %1139 = vst.msk [vmem:[#allocation3 + $0x58] sm:$0x1] %vm883, %v1007
    %1140 = vst.msk [vmem:[#allocation3 + $0x60] sm:$0xff] %vm875, %v1009
    %1141 = vst.msk [vmem:[#allocation3 + $0x68] sm:$0x1] %vm883, %v1011
    %1142 = vst.msk [vmem:[#allocation3 + $0x70] sm:$0xff] %vm875, %v1013
    %1143 = vst.msk [vmem:[#allocation3 + $0x78] sm:$0x1] %vm883, %v1015
    %1144 = vst.msk [vmem:[#allocation3 + $0x80] sm:$0xff] %vm875, %v1017
    %1145 = vst.msk [vmem:[#allocation3 + $0x88] sm:$0x1] %vm883, %v1019
    %1146 = vst.msk [vmem:[#allocation3 + $0x90] sm:$0xff] %vm875, %v1021
    %1147 = vst.msk [vmem:[#allocation3 + $0x98] sm:$0x1] %vm883, %v1023
    %1148 = vst.msk [vmem:[#allocation3 + $0xa0] sm:$0xff] %vm875, %v1025
    %1149 = vst.msk [vmem:[#allocation3 + $0xa8] sm:$0x1] %vm883, %v1027
    %1150 = vst.msk [vmem:[#allocation3 + $0xb0] sm:$0xff] %vm875, %v1029
    %1151 = vst.msk [vmem:[#allocation3 + $0xb8] sm:$0x1] %vm883, %v1031
    %1152 = vst.msk [vmem:[#allocation3 + $0xc0] sm:$0xff] %vm875, %v1033
    %1153 = vst.msk [vmem:[#allocation3 + $0xc8] sm:$0x1] %vm883, %v1035
    %1154 = vst.msk [vmem:[#allocation3 + $0xd0] sm:$0xff] %vm875, %v1037
    %1155 = vst.msk [vmem:[#allocation3 + $0xd8] sm:$0x1] %vm883, %v1039
    %1156 = vst.msk [vmem:[#allocation3 + $0xe0] sm:$0xff] %vm875, %v1041
    %1157 = vst.msk [vmem:[#allocation3 + $0xe8] sm:$0x1] %vm883, %v1043
    %1158 = vst.msk [vmem:[#allocation3 + $0xf0] sm:$0xff] %vm875, %v1045
    %1159 = vst.msk [vmem:[#allocation3 + $0xf8] sm:$0x1] %vm883, %v1047
    %1160 = vst.msk [vmem:[#allocation3 + $0x100] sm:$0xff] %vm875, %v1049
    %1161 = vst.msk [vmem:[#allocation3 + $0x108] sm:$0x1] %vm883, %v1051
    %1162 = vst.msk [vmem:[#allocation3 + $0x110] sm:$0xff] %vm875, %v1053
    %1163 = vst.msk [vmem:[#allocation3 + $0x118] sm:$0x1] %vm883, %v1055
    %1164 = vst.msk [vmem:[#allocation3 + $0x120] sm:$0xff] %vm875, %v1057
    %1165 = vst.msk [vmem:[#allocation3 + $0x128] sm:$0x1] %vm883, %v1059
    %1166 = vst.msk [vmem:[#allocation3 + $0x130] sm:$0xff] %vm875, %v1061
    %1167 = vst.msk [vmem:[#allocation3 + $0x138] sm:$0x1] %vm883, %v1063
    %1168 = vst.msk [vmem:[#allocation3 + $0x140] sm:$0xff] %vm875, %v1065
    %1169 = vst.msk [vmem:[#allocation3 + $0x148] sm:$0x1] %vm883, %v1067
    %1170 = vst.msk [vmem:[#allocation3 + $0x150] sm:$0xff] %vm875, %v1069
    %1171 = vst.msk [vmem:[#allocation3 + $0x158] sm:$0x1] %vm883, %v1071
    %1172 = vst.msk [vmem:[#allocation3 + $0x160] sm:$0xff] %vm875, %v1073
    %1173 = vst.msk [vmem:[#allocation3 + $0x168] sm:$0x1] %vm883, %v1075
    %1174 = vst.msk [vmem:[#allocation3 + $0x170] sm:$0xff] %vm875, %v1077
    %1175 = vst.msk [vmem:[#allocation3 + $0x178] sm:$0x1] %vm883, %v1079
    %1176 = vst.msk [vmem:[#allocation3 + $0x180] sm:$0xff] %vm875, %v1081
    %1177 = vst.msk [vmem:[#allocation3 + $0x188] sm:$0x1] %vm883, %v1083
    %1178 = vst.msk [vmem:[#allocation3 + $0x190] sm:$0xff] %vm875, %v1085
    %1179 = vst.msk [vmem:[#allocation3 + $0x198] sm:$0x1] %vm883, %v1087
    %1180 = vst.msk [vmem:[#allocation3 + $0x1a0] sm:$0xff] %vm875, %v1089
    %1181 = vst.msk [vmem:[#allocation3 + $0x1a8] sm:$0x1] %vm883, %v1091
    %1182 = vst.msk [vmem:[#allocation3 + $0x1b0] sm:$0xff] %vm875, %v1093
    %1183 = vst.msk [vmem:[#allocation3 + $0x1b8] sm:$0x1] %vm883, %v1095
    %1184 = vst.msk [vmem:[#allocation3 + $0x1c0] sm:$0xff] %vm875, %v1097
    %1185 = vst.msk [vmem:[#allocation3 + $0x1c8] sm:$0x1] %vm883, %v1099
    %1186 = vst.msk [vmem:[#allocation3 + $0x1d0] sm:$0xff] %vm875, %v1101
    %1187 = vst.msk [vmem:[#allocation3 + $0x1d8] sm:$0x1] %vm883, %v1103
    %1188 = vst.msk [vmem:[#allocation3 + $0x1e0] sm:$0xff] %vm875, %v1105
    %1189 = vst.msk [vmem:[#allocation3 + $0x1e8] sm:$0x1] %vm883, %v1107
    %1190 = vst.msk [vmem:[#allocation3 + $0x1f0] sm:$0xff] %vm875, %v1109
    %1191 = vst.msk [vmem:[#allocation3 + $0x1f8] sm:$0x1] %vm883, %v1111
    %1192 = vst.msk [vmem:[#allocation3 + $0x200] sm:$0xff] %vm875, %v1113
    %1193 = vst.msk [vmem:[#allocation3 + $0x208] sm:$0x1] %vm883, %v1115
    %1194 = vst.msk [vmem:[#allocation3 + $0x210] sm:$0xff] %vm875, %v1117
    %1195 = vst.msk [vmem:[#allocation3 + $0x218] sm:$0x1] %vm883, %v1119
    %1196 = vst.msk [vmem:[#allocation3 + $0x220] sm:$0xff] %vm875, %v1121
    %1197 = vst.msk [vmem:[#allocation3 + $0x228] sm:$0x1] %vm883, %v1123
    %1198 = vst.msk [vmem:[#allocation3 + $0x230] sm:$0xff] %vm875, %v1125
    %1199 = vst.msk [vmem:[#allocation3 + $0x238] sm:$0x1] %vm883, %v1127
    %s1200 = scalar_lea.vmem [#allocation2], 1
    %v1201 = vld [vmem:[%s1200] ss:$2 sm:$0xff]
    %s1202 = scalar_lea.vmem [#allocation2], 25
    %v1203 = vld [vmem:[%s1202] ss:$2 sm:$0xff]
    %s1204 = scalar_lea.vmem [#allocation2], 49
    %v1205 = vld [vmem:[%s1204] ss:$2 sm:$0xff]
    %s1206 = scalar_lea.vmem [#allocation2], 73
    %v1207 = vld [vmem:[%s1206] ss:$2 sm:$0xff]
    %s1208 = scalar_lea.vmem [#allocation2], 97
    %v1209 = vld [vmem:[%s1208] ss:$2 sm:$0xff]
    %s1210 = scalar_lea.vmem [#allocation2], 121
    %v1211 = vld [vmem:[%s1210] ss:$2 sm:$0xff]
    %s1212 = scalar_lea.vmem [#allocation2], 145
    %v1213 = vld [vmem:[%s1212] ss:$2 sm:$0xff]
    %s1214 = scalar_lea.vmem [#allocation2], 169
    %v1215 = vld [vmem:[%s1214] ss:$2 sm:$0xff]
    %s1216 = scalar_lea.vmem [#allocation2], 193
    %v1217 = vld [vmem:[%s1216] ss:$2 sm:$0xff]
    %s1218 = scalar_lea.vmem [#allocation2], 217
    %v1219 = vld [vmem:[%s1218] ss:$2 sm:$0xff]
    %s1220 = scalar_lea.vmem [#allocation2], 241
    %v1221 = vld [vmem:[%s1220] ss:$2 sm:$0xff]
    %s1222 = scalar_lea.vmem [#allocation2], 265
    %v1223 = vld [vmem:[%s1222] ss:$2 sm:$0xff]
    %s1224 = scalar_lea.vmem [#allocation2], 289
    %v1225 = vld [vmem:[%s1224] ss:$2 sm:$0xff]
    %s1226 = scalar_lea.vmem [#allocation2], 313
    %v1227 = vld [vmem:[%s1226] ss:$2 sm:$0xff]
    %s1228 = scalar_lea.vmem [#allocation2], 337
    %v1229 = vld [vmem:[%s1228] ss:$2 sm:$0xff]
    %s1230 = scalar_lea.vmem [#allocation2], 361
    %v1231 = vld [vmem:[%s1230] ss:$2 sm:$0xff]
    %s1232 = scalar_lea.vmem [#allocation2], 385
    %v1233 = vld [vmem:[%s1232] ss:$2 sm:$0xff]
    %s1234 = scalar_lea.vmem [#allocation2], 409
    %v1235 = vld [vmem:[%s1234] ss:$2 sm:$0xff]
    %s1236 = scalar_lea.vmem [#allocation2], 433
    %v1237 = vld [vmem:[%s1236] ss:$2 sm:$0xff]
    %s1238 = scalar_lea.vmem [#allocation2], 457
    %v1239 = vld [vmem:[%s1238] ss:$2 sm:$0xff]
    %s1240 = scalar_lea.vmem [#allocation2], 481
    %v1241 = vld [vmem:[%s1240] ss:$2 sm:$0xff]
    %s1242 = scalar_lea.vmem [#allocation2], 505
    %v1243 = vld [vmem:[%s1242] ss:$2 sm:$0xff]
    %s1244 = scalar_lea.vmem [#allocation2], 529
    %v1245 = vld [vmem:[%s1244] ss:$2 sm:$0xff]
    %s1246 = scalar_lea.vmem [#allocation2], 553
    %v1247 = vld [vmem:[%s1246] ss:$2 sm:$0xff]
    %s1248 = scalar_lea.vmem [#allocation2], 577
    %v1249 = vld [vmem:[%s1248] ss:$2 sm:$0xff]
    %s1250 = scalar_lea.vmem [#allocation2], 601
    %v1251 = vld [vmem:[%s1250] ss:$2 sm:$0xff]
    %s1252 = scalar_lea.vmem [#allocation2], 625
    %v1253 = vld [vmem:[%s1252] ss:$2 sm:$0xff]
    %s1254 = scalar_lea.vmem [#allocation2], 649
    %v1255 = vld [vmem:[%s1254] ss:$2 sm:$0xff]
    %s1256 = scalar_lea.vmem [#allocation2], 673
    %v1257 = vld [vmem:[%s1256] ss:$2 sm:$0xff]
    %s1258 = scalar_lea.vmem [#allocation2], 697
    %v1259 = vld [vmem:[%s1258] ss:$2 sm:$0xff]
    %s1260 = scalar_lea.vmem [#allocation2], 721
    %v1261 = vld [vmem:[%s1260] ss:$2 sm:$0xff]
    %s1262 = scalar_lea.vmem [#allocation2], 745
    %v1263 = vld [vmem:[%s1262] ss:$2 sm:$0xff]
    %s1264 = scalar_lea.vmem [#allocation2], 769
    %v1265 = vld [vmem:[%s1264] ss:$2 sm:$0xff]
    %s1266 = scalar_lea.vmem [#allocation2], 793
    %v1267 = vld [vmem:[%s1266] ss:$2 sm:$0xff]
    %s1268 = scalar_lea.vmem [#allocation2], 817
    %v1269 = vld [vmem:[%s1268] ss:$2 sm:$0xff]
    %s1270 = scalar_lea.vmem [#allocation2], 841
    %v1271 = vld [vmem:[%s1270] ss:$2 sm:$0xff]
    %1272 = vst.msk [vmem:[#allocation4] sm:$0xff] %vm875, %v1201
    %1273 = vst.msk [vmem:[#allocation4 + $0x8] sm:$0xff] %vm875, %v1203
    %1274 = vst.msk [vmem:[#allocation4 + $0x10] sm:$0xff] %vm875, %v1205
    %1275 = vst.msk [vmem:[#allocation4 + $0x18] sm:$0xff] %vm875, %v1207
    %1276 = vst.msk [vmem:[#allocation4 + $0x20] sm:$0xff] %vm875, %v1209
    %1277 = vst.msk [vmem:[#allocation4 + $0x28] sm:$0xff] %vm875, %v1211
    %1278 = vst.msk [vmem:[#allocation4 + $0x30] sm:$0xff] %vm875, %v1213
    %1279 = vst.msk [vmem:[#allocation4 + $0x38] sm:$0xff] %vm875, %v1215
    %1280 = vst.msk [vmem:[#allocation4 + $0x40] sm:$0xff] %vm875, %v1217
    %1281 = vst.msk [vmem:[#allocation4 + $0x48] sm:$0xff] %vm875, %v1219
    %1282 = vst.msk [vmem:[#allocation4 + $0x50] sm:$0xff] %vm875, %v1221
    %1283 = vst.msk [vmem:[#allocation4 + $0x58] sm:$0xff] %vm875, %v1223
    %1284 = vst.msk [vmem:[#allocation4 + $0x60] sm:$0xff] %vm875, %v1225
    %1285 = vst.msk [vmem:[#allocation4 + $0x68] sm:$0xff] %vm875, %v1227
    %1286 = vst.msk [vmem:[#allocation4 + $0x70] sm:$0xff] %vm875, %v1229
    %1287 = vst.msk [vmem:[#allocation4 + $0x78] sm:$0xff] %vm875, %v1231
    %1288 = vst.msk [vmem:[#allocation4 + $0x80] sm:$0xff] %vm875, %v1233
    %1289 = vst.msk [vmem:[#allocation4 + $0x88] sm:$0xff] %vm875, %v1235
    %1290 = vst.msk [vmem:[#allocation4 + $0x90] sm:$0xff] %vm875, %v1237
    %1291 = vst.msk [vmem:[#allocation4 + $0x98] sm:$0xff] %vm875, %v1239
    %1292 = vst.msk [vmem:[#allocation4 + $0xa0] sm:$0xff] %vm875, %v1241
    %1293 = vst.msk [vmem:[#allocation4 + $0xa8] sm:$0xff] %vm875, %v1243
    %1294 = vst.msk [vmem:[#allocation4 + $0xb0] sm:$0xff] %vm875, %v1245
    %1295 = vst.msk [vmem:[#allocation4 + $0xb8] sm:$0xff] %vm875, %v1247
    %1296 = vst.msk [vmem:[#allocation4 + $0xc0] sm:$0xff] %vm875, %v1249
    %1297 = vst.msk [vmem:[#allocation4 + $0xc8] sm:$0xff] %vm875, %v1251
    %1298 = vst.msk [vmem:[#allocation4 + $0xd0] sm:$0xff] %vm875, %v1253
    %1299 = vst.msk [vmem:[#allocation4 + $0xd8] sm:$0xff] %vm875, %v1255
    %1300 = vst.msk [vmem:[#allocation4 + $0xe0] sm:$0xff] %vm875, %v1257
    %1301 = vst.msk [vmem:[#allocation4 + $0xe8] sm:$0xff] %vm875, %v1259
    %1302 = vst.msk [vmem:[#allocation4 + $0xf0] sm:$0xff] %vm875, %v1261
    %1303 = vst.msk [vmem:[#allocation4 + $0xf8] sm:$0xff] %vm875, %v1263
    %1304 = vst.msk [vmem:[#allocation4 + $0x100] sm:$0xff] %vm875, %v1265
    %1305 = vst.msk [vmem:[#allocation4 + $0x108] sm:$0xff] %vm875, %v1267
    %1306 = vst.msk [vmem:[#allocation4 + $0x110] sm:$0xff] %vm875, %v1269
    %1307 = vst.msk [vmem:[#allocation4 + $0x118] sm:$0xff] %vm875, %v1271
    %v1308 = vld [vmem:[#allocation3] sm:$0xff]
    %v1309 = vld [vmem:[#allocation3 + $0x8] sm:$0x1]
    %v1310 = vld [vmem:[#allocation3 + $0x20] sm:$0xff]
    %v1311 = vld [vmem:[#allocation3 + $0x28] sm:$0x1]
    %v1312 = vld [vmem:[#allocation3 + $0x40] sm:$0xff]
    %v1313 = vld [vmem:[#allocation3 + $0x48] sm:$0x1]
    %v1314 = vld [vmem:[#allocation3 + $0x60] sm:$0xff]
    %v1315 = vld [vmem:[#allocation3 + $0x68] sm:$0x1]
    %v1316 = vld [vmem:[#allocation3 + $0x80] sm:$0xff]
    %v1317 = vld [vmem:[#allocation3 + $0x88] sm:$0x1]
    %v1318 = vld [vmem:[#allocation3 + $0xa0] sm:$0xff]
    %v1319 = vld [vmem:[#allocation3 + $0xa8] sm:$0x1]
    %v1320 = vld [vmem:[#allocation3 + $0xc0] sm:$0xff]
    %v1321 = vld [vmem:[#allocation3 + $0xc8] sm:$0x1]
    %v1322 = vld [vmem:[#allocation3 + $0xe0] sm:$0xff]
    %v1323 = vld [vmem:[#allocation3 + $0xe8] sm:$0x1]
    %v1324 = vld [vmem:[#allocation3 + $0x120] sm:$0xff]
    %v1325 = vld [vmem:[#allocation3 + $0x128] sm:$0x1]
    %v1326 = vld [vmem:[#allocation3 + $0x140] sm:$0xff]
    %v1327 = vld [vmem:[#allocation3 + $0x148] sm:$0x1]
    %v1328 = vld [vmem:[#allocation3 + $0x160] sm:$0xff]
    %v1329 = vld [vmem:[#allocation3 + $0x168] sm:$0x1]
    %v1330 = vld [vmem:[#allocation3 + $0x180] sm:$0xff]
    %v1331 = vld [vmem:[#allocation3 + $0x188] sm:$0x1]
    %v1332 = vld [vmem:[#allocation3 + $0x1a0] sm:$0xff]
    %v1333 = vld [vmem:[#allocation3 + $0x1a8] sm:$0x1]
    %v1334 = vld [vmem:[#allocation3 + $0x1c0] sm:$0xff]
    %v1335 = vld [vmem:[#allocation3 + $0x1c8] sm:$0x1]
    %v1336 = vld [vmem:[#allocation3 + $0x1e0] sm:$0xff]
    %v1337 = vld [vmem:[#allocation3 + $0x1e8] sm:$0x1]
    %v1338 = vld [vmem:[#allocation3 + $0x200] sm:$0xff]
    %v1339 = vld [vmem:[#allocation3 + $0x208] sm:$0x1]
    %v1340 = vld [vmem:[#allocation4] sm:$0xff]
    %v1341 = vld [vmem:[#allocation4 + $0x10] sm:$0xff]
    %v1342 = vld [vmem:[#allocation4 + $0x20] sm:$0xff]
    %v1343 = vld [vmem:[#allocation4 + $0x30] sm:$0xff]
    %v1344 = vld [vmem:[#allocation4 + $0x40] sm:$0xff]
    %v1345 = vld [vmem:[#allocation4 + $0x50] sm:$0xff]
    %v1346 = vld [vmem:[#allocation4 + $0x60] sm:$0xff]
    %v1347 = vld [vmem:[#allocation4 + $0x70] sm:$0xff]
    %v1348 = vld [vmem:[#allocation4 + $0x90] sm:$0xff]
    %v1349 = vld [vmem:[#allocation4 + $0xa0] sm:$0xff]
    %v1350 = vld [vmem:[#allocation4 + $0xb0] sm:$0xff]
    %v1351 = vld [vmem:[#allocation4 + $0xc0] sm:$0xff]
    %v1352 = vld [vmem:[#allocation4 + $0xd0] sm:$0xff]
    %v1353 = vld [vmem:[#allocation4 + $0xe0] sm:$0xff]
    %v1354 = vld [vmem:[#allocation4 + $0xf0] sm:$0xff]
    %v1355 = vld [vmem:[#allocation4 + $0x100] sm:$0xff]
    %v1356 = vld [vmem:[%s3] sm:$0x1]
    %v1357 = vlaneseq
    %v1358 = vshrl.u32 %v1357, 7
    %v1359 = vsub.s32 0, %v1358
    %v1360 = vrot.slane %v1356, %v1359
    %v1361 = vmul.f32 %v1308, %v1360
    %v1362 = vmul.f32 %v1310, %v1360
    %v1363 = vmul.f32 %v1312, %v1360
    %v1364 = vmul.f32 %v1314, %v1360
    %v1365 = vmul.f32 %v1316, %v1360
    %v1366 = vmul.f32 %v1318, %v1360
    %v1367 = vmul.f32 %v1320, %v1360
    %v1368 = vmul.f32 %v1322, %v1360
    %v1369 = vmul.f32 %v1324, %v1360
    %v1370 = vmul.f32 %v1326, %v1360
    %v1371 = vmul.f32 %v1328, %v1360
    %v1372 = vmul.f32 %v1330, %v1360
    %v1373 = vmul.f32 %v1332, %v1360
    %v1374 = vmul.f32 %v1334, %v1360
    %v1375 = vmul.f32 %v1336, %v1360
    %v1376 = vmul.f32 %v1338, %v1360
    %v1377 = vadd.f32 %v1361, 0.0
    %v1378 = vadd.f32 %v1362, 0.0
    %v1379 = vadd.f32 %v1363, 0.0
    %v1380 = vadd.f32 %v1364, 0.0
    %v1381 = vadd.f32 %v1365, 0.0
    %v1382 = vadd.f32 %v1366, 0.0
    %v1383 = vadd.f32 %v1367, 0.0
    %v1384 = vadd.f32 %v1368, 0.0
    %v1385 = vadd.f32 %v1369, 0.0
    %v1386 = vadd.f32 %v1370, 0.0
    %v1387 = vadd.f32 %v1371, 0.0
    %v1388 = vadd.f32 %v1372, 0.0
    %v1389 = vadd.f32 %v1373, 0.0
    %v1390 = vadd.f32 %v1374, 0.0
    %v1391 = vadd.f32 %v1375, 0.0
    %v1392 = vadd.f32 %v1376, 0.0
    %v1393 = vld [vmem:[%s3 + $0x1] sm:$0x1]
    %v1394 = vlaneseq
    %v1395 = vshrl.u32 %v1394, 7
    %v1396 = vsub.s32 0, %v1395
    %v1397 = vrot.slane %v1393, %v1396
    %v1398 = vmul.f32 %v1340, %v1397
    %v1399 = vmul.f32 %v1341, %v1397
    %v1400 = vmul.f32 %v1342, %v1397
    %v1401 = vmul.f32 %v1343, %v1397
    %v1402 = vmul.f32 %v1344, %v1397
    %v1403 = vmul.f32 %v1345, %v1397
    %v1404 = vmul.f32 %v1346, %v1397
    %v1405 = vmul.f32 %v1347, %v1397
    %v1406 = vmul.f32 %v1348, %v1397
    %v1407 = vmul.f32 %v1349, %v1397
    %v1408 = vmul.f32 %v1350, %v1397
    %v1409 = vmul.f32 %v1351, %v1397
    %v1410 = vmul.f32 %v1352, %v1397
    %v1411 = vmul.f32 %v1353, %v1397
    %v1412 = vmul.f32 %v1354, %v1397
    %v1413 = vmul.f32 %v1355, %v1397
    %v1414 = vadd.f32 %v1377, %v1398
    %v1415 = vadd.f32 %v1378, %v1399
    %v1416 = vadd.f32 %v1379, %v1400
    %v1417 = vadd.f32 %v1380, %v1401
    %v1418 = vadd.f32 %v1381, %v1402
    %v1419 = vadd.f32 %v1382, %v1403
    %v1420 = vadd.f32 %v1383, %v1404
    %v1421 = vadd.f32 %v1384, %v1405
    %v1422 = vadd.f32 %v1385, %v1406
    %v1423 = vadd.f32 %v1386, %v1407
    %v1424 = vadd.f32 %v1387, %v1408
    %v1425 = vadd.f32 %v1388, %v1409
    %v1426 = vadd.f32 %v1389, %v1410
    %v1427 = vadd.f32 %v1390, %v1411
    %v1428 = vadd.f32 %v1391, %v1412
    %v1429 = vadd.f32 %v1392, %v1413
    %v1430 = vld [vmem:[%s3 + $0x2] sm:$0x1]
    %v1431 = vlaneseq
    %v1432 = vshrl.u32 %v1431, 7
    %v1433 = vsub.s32 0, %v1432
    %v1434 = vrot.slane %v1430, %v1433
    %v1435 = vmul.f32 %v1308, %v1434
    %v1436 = vmul.f32 %v1309, %v1434
    %v1437 = vmul.f32 %v1310, %v1434
    %v1438 = vmul.f32 %v1311, %v1434
    %v1439 = vmul.f32 %v1312, %v1434
    %v1440 = vmul.f32 %v1313, %v1434
    %v1441 = vmul.f32 %v1314, %v1434
    %v1442 = vmul.f32 %v1315, %v1434
    %v1443 = vmul.f32 %v1316, %v1434
    %v1444 = vmul.f32 %v1317, %v1434
    %v1445 = vmul.f32 %v1318, %v1434
    %v1446 = vmul.f32 %v1319, %v1434
    %v1447 = vmul.f32 %v1320, %v1434
    %v1448 = vmul.f32 %v1321, %v1434
    %v1449 = vmul.f32 %v1322, %v1434
    %v1450 = vmul.f32 %v1323, %v1434
    %v1451 = vmul.f32 %v1324, %v1434
    %v1452 = vmul.f32 %v1325, %v1434
    %v1453 = vmul.f32 %v1326, %v1434
    %v1454 = vmul.f32 %v1327, %v1434
    %v1455 = vmul.f32 %v1328, %v1434
    %v1456 = vmul.f32 %v1329, %v1434
    %v1457 = vmul.f32 %v1330, %v1434
    %v1458 = vmul.f32 %v1331, %v1434
    %v1459 = vmul.f32 %v1332, %v1434
    %v1460 = vmul.f32 %v1333, %v1434
    %v1461 = vmul.f32 %v1334, %v1434
    %v1462 = vmul.f32 %v1335, %v1434
    %v1463 = vmul.f32 %v1336, %v1434
    %v1464 = vmul.f32 %v1337, %v1434
    %v1465 = vmul.f32 %v1338, %v1434
    %v1466 = vmul.f32 %v1339, %v1434
    %vm1499 = vcmask 1046528
    %v1500 = vrot.slane %v1435, 1
    %v1501 = vrot.slane %v1436, 1
    %v1502 = vsel %vm1499, %v1500, %v1501
    %v1503 = vrot.slane %v1437, 1
    %v1504 = vrot.slane %v1438, 1
    %v1505 = vsel %vm1499, %v1503, %v1504
    %v1506 = vrot.slane %v1439, 1
    %v1507 = vrot.slane %v1440, 1
    %v1508 = vsel %vm1499, %v1506, %v1507
    %v1509 = vrot.slane %v1441, 1
    %v1510 = vrot.slane %v1442, 1
    %v1511 = vsel %vm1499, %v1509, %v1510
    %v1512 = vrot.slane %v1443, 1
    %v1513 = vrot.slane %v1444, 1
    %v1514 = vsel %vm1499, %v1512, %v1513
    %v1515 = vrot.slane %v1445, 1
    %v1516 = vrot.slane %v1446, 1
    %v1517 = vsel %vm1499, %v1515, %v1516
    %v1518 = vrot.slane %v1447, 1
    %v1519 = vrot.slane %v1448, 1
    %v1520 = vsel %vm1499, %v1518, %v1519
    %v1521 = vrot.slane %v1449, 1
    %v1522 = vrot.slane %v1450, 1
    %v1523 = vsel %vm1499, %v1521, %v1522
    %v1524 = vrot.slane %v1451, 1
    %v1525 = vrot.slane %v1452, 1
    %v1526 = vsel %vm1499, %v1524, %v1525
    %v1527 = vrot.slane %v1453, 1
    %v1528 = vrot.slane %v1454, 1
    %v1529 = vsel %vm1499, %v1527, %v1528
    %v1530 = vrot.slane %v1455, 1
    %v1531 = vrot.slane %v1456, 1
    %v1532 = vsel %vm1499, %v1530, %v1531
    %v1533 = vrot.slane %v1457, 1
    %v1534 = vrot.slane %v1458, 1
    %v1535 = vsel %vm1499, %v1533, %v1534
    %v1536 = vrot.slane %v1459, 1
    %v1537 = vrot.slane %v1460, 1
    %v1538 = vsel %vm1499, %v1536, %v1537
    %v1539 = vrot.slane %v1461, 1
    %v1540 = vrot.slane %v1462, 1
    %v1541 = vsel %vm1499, %v1539, %v1540
    %v1542 = vrot.slane %v1463, 1
    %v1543 = vrot.slane %v1464, 1
    %v1544 = vsel %vm1499, %v1542, %v1543
    %v1545 = vrot.slane %v1465, 1
    %v1546 = vrot.slane %v1466, 1
    %v1547 = vsel %vm1499, %v1545, %v1546
    %v1564 = vadd.f32 %v1414, %v1502
    %v1565 = vadd.f32 %v1415, %v1505
    %v1566 = vadd.f32 %v1416, %v1508
    %v1567 = vadd.f32 %v1417, %v1511
    %v1568 = vadd.f32 %v1418, %v1514
    %v1569 = vadd.f32 %v1419, %v1517
    %v1570 = vadd.f32 %v1420, %v1520
    %v1571 = vadd.f32 %v1421, %v1523
    %v1572 = vadd.f32 %v1422, %v1526
    %v1573 = vadd.f32 %v1423, %v1529
    %v1574 = vadd.f32 %v1424, %v1532
    %v1575 = vadd.f32 %v1425, %v1535
    %v1576 = vadd.f32 %v1426, %v1538
    %v1577 = vadd.f32 %v1427, %v1541
    %v1578 = vadd.f32 %v1428, %v1544
    %v1579 = vadd.f32 %v1429, %v1547
    %s1580 = scalar_lea.vmem [#allocation3], 16
    %v1581 = vld [vmem:[%s1580] sm:$0xff]
    %v1582 = vld [vmem:[%s1580 + $0x8] sm:$0x1]
    %v1583 = vld [vmem:[%s1580 + $0x20] sm:$0xff]
    %v1584 = vld [vmem:[%s1580 + $0x28] sm:$0x1]
    %v1585 = vld [vmem:[%s1580 + $0x40] sm:$0xff]
    %v1586 = vld [vmem:[%s1580 + $0x48] sm:$0x1]
    %v1587 = vld [vmem:[%s1580 + $0x60] sm:$0xff]
    %v1588 = vld [vmem:[%s1580 + $0x68] sm:$0x1]
    %v1589 = vld [vmem:[%s1580 + $0x80] sm:$0xff]
    %v1590 = vld [vmem:[%s1580 + $0x88] sm:$0x1]
    %v1591 = vld [vmem:[%s1580 + $0xa0] sm:$0xff]
    %v1592 = vld [vmem:[%s1580 + $0xa8] sm:$0x1]
    %v1593 = vld [vmem:[%s1580 + $0xc0] sm:$0xff]
    %v1594 = vld [vmem:[%s1580 + $0xc8] sm:$0x1]
    %v1595 = vld [vmem:[%s1580 + $0xe0] sm:$0xff]
    %v1596 = vld [vmem:[%s1580 + $0xe8] sm:$0x1]
    %v1597 = vld [vmem:[%s1580 + $0x120] sm:$0xff]
    %v1598 = vld [vmem:[%s1580 + $0x128] sm:$0x1]
    %v1599 = vld [vmem:[%s1580 + $0x140] sm:$0xff]
    %v1600 = vld [vmem:[%s1580 + $0x148] sm:$0x1]
    %v1601 = vld [vmem:[%s1580 + $0x160] sm:$0xff]
    %v1602 = vld [vmem:[%s1580 + $0x168] sm:$0x1]
    %v1603 = vld [vmem:[%s1580 + $0x180] sm:$0xff]
    %v1604 = vld [vmem:[%s1580 + $0x188] sm:$0x1]
    %v1605 = vld [vmem:[%s1580 + $0x1a0] sm:$0xff]
    %v1606 = vld [vmem:[%s1580 + $0x1a8] sm:$0x1]
    %v1607 = vld [vmem:[%s1580 + $0x1c0] sm:$0xff]
    %v1608 = vld [vmem:[%s1580 + $0x1c8] sm:$0x1]
    %v1609 = vld [vmem:[%s1580 + $0x1e0] sm:$0xff]
    %v1610 = vld [vmem:[%s1580 + $0x1e8] sm:$0x1]
    %v1611 = vld [vmem:[%s1580 + $0x200] sm:$0xff]
    %v1612 = vld [vmem:[%s1580 + $0x208] sm:$0x1]
    %s1613 = scalar_lea.vmem [#allocation4], 8
    %v1614 = vld [vmem:[%s1613] sm:$0xff]
    %v1615 = vld [vmem:[%s1613 + $0x10] sm:$0xff]
    %v1616 = vld [vmem:[%s1613 + $0x20] sm:$0xff]
    %v1617 = vld [vmem:[%s1613 + $0x30] sm:$0xff]
    %v1618 = vld [vmem:[%s1613 + $0x40] sm:$0xff]
    %v1619 = vld [vmem:[%s1613 + $0x50] sm:$0xff]
    %v1620 = vld [vmem:[%s1613 + $0x60] sm:$0xff]
    %v1621 = vld [vmem:[%s1613 + $0x70] sm:$0xff]
    %v1622 = vld [vmem:[%s1613 + $0x90] sm:$0xff]
    %v1623 = vld [vmem:[%s1613 + $0xa0] sm:$0xff]
    %v1624 = vld [vmem:[%s1613 + $0xb0] sm:$0xff]
    %v1625 = vld [vmem:[%s1613 + $0xc0] sm:$0xff]
    %v1626 = vld [vmem:[%s1613 + $0xd0] sm:$0xff]
    %v1627 = vld [vmem:[%s1613 + $0xe0] sm:$0xff]
    %v1628 = vld [vmem:[%s1613 + $0xf0] sm:$0xff]
    %v1629 = vld [vmem:[%s1613 + $0x100] sm:$0xff]
    %v1630 = vld [vmem:[%s3 + $0x3] sm:$0x1]
    %v1631 = vlaneseq
    %v1632 = vshrl.u32 %v1631, 7
    %v1633 = vsub.s32 0, %v1632
    %v1634 = vrot.slane %v1630, %v1633
    %v1635 = vmul.f32 %v1581, %v1634
    %v1636 = vmul.f32 %v1583, %v1634
    %v1637 = vmul.f32 %v1585, %v1634
    %v1638 = vmul.f32 %v1587, %v1634
    %v1639 = vmul.f32 %v1589, %v1634
    %v1640 = vmul.f32 %v1591, %v1634
    %v1641 = vmul.f32 %v1593, %v1634
    %v1642 = vmul.f32 %v1595, %v1634
    %v1643 = vmul.f32 %v1597, %v1634
    %v1644 = vmul.f32 %v1599, %v1634
    %v1645 = vmul.f32 %v1601, %v1634
    %v1646 = vmul.f32 %v1603, %v1634
    %v1647 = vmul.f32 %v1605, %v1634
    %v1648 = vmul.f32 %v1607, %v1634
    %v1649 = vmul.f32 %v1609, %v1634
    %v1650 = vmul.f32 %v1611, %v1634
    %v1651 = vadd.f32 %v1564, %v1635
    %v1652 = vadd.f32 %v1565, %v1636
    %v1653 = vadd.f32 %v1566, %v1637
    %v1654 = vadd.f32 %v1567, %v1638
    %v1655 = vadd.f32 %v1568, %v1639
    %v1656 = vadd.f32 %v1569, %v1640
    %v1657 = vadd.f32 %v1570, %v1641
    %v1658 = vadd.f32 %v1571, %v1642
    %v1659 = vadd.f32 %v1572, %v1643
    %v1660 = vadd.f32 %v1573, %v1644
    %v1661 = vadd.f32 %v1574, %v1645
    %v1662 = vadd.f32 %v1575, %v1646
    %v1663 = vadd.f32 %v1576, %v1647
    %v1664 = vadd.f32 %v1577, %v1648
    %v1665 = vadd.f32 %v1578, %v1649
    %v1666 = vadd.f32 %v1579, %v1650
    %v1667 = vld [vmem:[%s3 + $0x4] sm:$0x1]
    %v1668 = vlaneseq
    %v1669 = vshrl.u32 %v1668, 7
    %v1670 = vsub.s32 0, %v1669
    %v1671 = vrot.slane %v1667, %v1670
    %v1672 = vmul.f32 %v1614, %v1671
    %v1673 = vmul.f32 %v1615, %v1671
    %v1674 = vmul.f32 %v1616, %v1671
    %v1675 = vmul.f32 %v1617, %v1671
    %v1676 = vmul.f32 %v1618, %v1671
    %v1677 = vmul.f32 %v1619, %v1671
    %v1678 = vmul.f32 %v1620, %v1671
    %v1679 = vmul.f32 %v1621, %v1671
    %v1680 = vmul.f32 %v1622, %v1671
    %v1681 = vmul.f32 %v1623, %v1671
    %v1682 = vmul.f32 %v1624, %v1671
    %v1683 = vmul.f32 %v1625, %v1671
    %v1684 = vmul.f32 %v1626, %v1671
    %v1685 = vmul.f32 %v1627, %v1671
    %v1686 = vmul.f32 %v1628, %v1671
    %v1687 = vmul.f32 %v1629, %v1671
    %v1688 = vadd.f32 %v1651, %v1672
    %v1689 = vadd.f32 %v1652, %v1673
    %v1690 = vadd.f32 %v1653, %v1674
    %v1691 = vadd.f32 %v1654, %v1675
    %v1692 = vadd.f32 %v1655, %v1676
    %v1693 = vadd.f32 %v1656, %v1677
    %v1694 = vadd.f32 %v1657, %v1678
    %v1695 = vadd.f32 %v1658, %v1679
    %v1696 = vadd.f32 %v1659, %v1680
    %v1697 = vadd.f32 %v1660, %v1681
    %v1698 = vadd.f32 %v1661, %v1682
    %v1699 = vadd.f32 %v1662, %v1683
    %v1700 = vadd.f32 %v1663, %v1684
    %v1701 = vadd.f32 %v1664, %v1685
    %v1702 = vadd.f32 %v1665, %v1686
    %v1703 = vadd.f32 %v1666, %v1687
    %v1704 = vld [vmem:[%s3 + $0x5] sm:$0x1]
    %v1705 = vlaneseq
    %v1706 = vshrl.u32 %v1705, 7
    %v1707 = vsub.s32 0, %v1706
    %v1708 = vrot.slane %v1704, %v1707
    %v1709 = vmul.f32 %v1581, %v1708
    %v1710 = vmul.f32 %v1582, %v1708
    %v1711 = vmul.f32 %v1583, %v1708
    %v1712 = vmul.f32 %v1584, %v1708
    %v1713 = vmul.f32 %v1585, %v1708
    %v1714 = vmul.f32 %v1586, %v1708
    %v1715 = vmul.f32 %v1587, %v1708
    %v1716 = vmul.f32 %v1588, %v1708
    %v1717 = vmul.f32 %v1589, %v1708
    %v1718 = vmul.f32 %v1590, %v1708
    %v1719 = vmul.f32 %v1591, %v1708
    %v1720 = vmul.f32 %v1592, %v1708
    %v1721 = vmul.f32 %v1593, %v1708
    %v1722 = vmul.f32 %v1594, %v1708
    %v1723 = vmul.f32 %v1595, %v1708
    %v1724 = vmul.f32 %v1596, %v1708
    %v1725 = vmul.f32 %v1597, %v1708
    %v1726 = vmul.f32 %v1598, %v1708
    %v1727 = vmul.f32 %v1599, %v1708
    %v1728 = vmul.f32 %v1600, %v1708
    %v1729 = vmul.f32 %v1601, %v1708
    %v1730 = vmul.f32 %v1602, %v1708
    %v1731 = vmul.f32 %v1603, %v1708
    %v1732 = vmul.f32 %v1604, %v1708
    %v1733 = vmul.f32 %v1605, %v1708
    %v1734 = vmul.f32 %v1606, %v1708
    %v1735 = vmul.f32 %v1607, %v1708
    %v1736 = vmul.f32 %v1608, %v1708
    %v1737 = vmul.f32 %v1609, %v1708
    %v1738 = vmul.f32 %v1610, %v1708
    %v1739 = vmul.f32 %v1611, %v1708
    %v1740 = vmul.f32 %v1612, %v1708
    %v1773 = vrot.slane %v1709, 1
    %v1774 = vrot.slane %v1710, 1
    %v1775 = vsel %vm1499, %v1773, %v1774
    %v1776 = vrot.slane %v1711, 1
    %v1777 = vrot.slane %v1712, 1
    %v1778 = vsel %vm1499, %v1776, %v1777
    %v1779 = vrot.slane %v1713, 1
    %v1780 = vrot.slane %v1714, 1
    %v1781 = vsel %vm1499, %v1779, %v1780
    %v1782 = vrot.slane %v1715, 1
    %v1783 = vrot.slane %v1716, 1
    %v1784 = vsel %vm1499, %v1782, %v1783
    %v1785 = vrot.slane %v1717, 1
    %v1786 = vrot.slane %v1718, 1
    %v1787 = vsel %vm1499, %v1785, %v1786
    %v1788 = vrot.slane %v1719, 1
    %v1789 = vrot.slane %v1720, 1
    %v1790 = vsel %vm1499, %v1788, %v1789
    %v1791 = vrot.slane %v1721, 1
    %v1792 = vrot.slane %v1722, 1
    %v1793 = vsel %vm1499, %v1791, %v1792
    %v1794 = vrot.slane %v1723, 1
    %v1795 = vrot.slane %v1724, 1
    %v1796 = vsel %vm1499, %v1794, %v1795
    %v1797 = vrot.slane %v1725, 1
    %v1798 = vrot.slane %v1726, 1
    %v1799 = vsel %vm1499, %v1797, %v1798
    %v1800 = vrot.slane %v1727, 1
    %v1801 = vrot.slane %v1728, 1
    %v1802 = vsel %vm1499, %v1800, %v1801
    %v1803 = vrot.slane %v1729, 1
    %v1804 = vrot.slane %v1730, 1
    %v1805 = vsel %vm1499, %v1803, %v1804
    %v1806 = vrot.slane %v1731, 1
    %v1807 = vrot.slane %v1732, 1
    %v1808 = vsel %vm1499, %v1806, %v1807
    %v1809 = vrot.slane %v1733, 1
    %v1810 = vrot.slane %v1734, 1
    %v1811 = vsel %vm1499, %v1809, %v1810
    %v1812 = vrot.slane %v1735, 1
    %v1813 = vrot.slane %v1736, 1
    %v1814 = vsel %vm1499, %v1812, %v1813
    %v1815 = vrot.slane %v1737, 1
    %v1816 = vrot.slane %v1738, 1
    %v1817 = vsel %vm1499, %v1815, %v1816
    %v1818 = vrot.slane %v1739, 1
    %v1819 = vrot.slane %v1740, 1
    %v1820 = vsel %vm1499, %v1818, %v1819
    %v1837 = vadd.f32 %v1688, %v1775
    %v1838 = vadd.f32 %v1689, %v1778
    %v1839 = vadd.f32 %v1690, %v1781
    %v1840 = vadd.f32 %v1691, %v1784
    %v1841 = vadd.f32 %v1692, %v1787
    %v1842 = vadd.f32 %v1693, %v1790
    %v1843 = vadd.f32 %v1694, %v1793
    %v1844 = vadd.f32 %v1695, %v1796
    %v1845 = vadd.f32 %v1696, %v1799
    %v1846 = vadd.f32 %v1697, %v1802
    %v1847 = vadd.f32 %v1698, %v1805
    %v1848 = vadd.f32 %v1699, %v1808
    %v1849 = vadd.f32 %v1700, %v1811
    %v1850 = vadd.f32 %v1701, %v1814
    %v1851 = vadd.f32 %v1702, %v1817
    %v1852 = vadd.f32 %v1703, %v1820
    %s1853 = scalar_lea.vmem [#allocation3], 32
    %v1854 = vld [vmem:[%s1853] sm:$0xff]
    %v1855 = vld [vmem:[%s1853 + $0x8] sm:$0x1]
    %v1856 = vld [vmem:[%s1853 + $0x20] sm:$0xff]
    %v1857 = vld [vmem:[%s1853 + $0x28] sm:$0x1]
    %v1858 = vld [vmem:[%s1853 + $0x40] sm:$0xff]
    %v1859 = vld [vmem:[%s1853 + $0x48] sm:$0x1]
    %v1860 = vld [vmem:[%s1853 + $0x60] sm:$0xff]
    %v1861 = vld [vmem:[%s1853 + $0x68] sm:$0x1]
    %v1862 = vld [vmem:[%s1853 + $0x80] sm:$0xff]
    %v1863 = vld [vmem:[%s1853 + $0x88] sm:$0x1]
    %v1864 = vld [vmem:[%s1853 + $0xa0] sm:$0xff]
    %v1865 = vld [vmem:[%s1853 + $0xa8] sm:$0x1]
    %v1866 = vld [vmem:[%s1853 + $0xc0] sm:$0xff]
    %v1867 = vld [vmem:[%s1853 + $0xc8] sm:$0x1]
    %v1868 = vld [vmem:[%s1853 + $0xe0] sm:$0xff]
    %v1869 = vld [vmem:[%s1853 + $0xe8] sm:$0x1]
    %v1870 = vld [vmem:[%s1853 + $0x120] sm:$0xff]
    %v1871 = vld [vmem:[%s1853 + $0x128] sm:$0x1]
    %v1872 = vld [vmem:[%s1853 + $0x140] sm:$0xff]
    %v1873 = vld [vmem:[%s1853 + $0x148] sm:$0x1]
    %v1874 = vld [vmem:[%s1853 + $0x160] sm:$0xff]
    %v1875 = vld [vmem:[%s1853 + $0x168] sm:$0x1]
    %v1876 = vld [vmem:[%s1853 + $0x180] sm:$0xff]
    %v1877 = vld [vmem:[%s1853 + $0x188] sm:$0x1]
    %v1878 = vld [vmem:[%s1853 + $0x1a0] sm:$0xff]
    %v1879 = vld [vmem:[%s1853 + $0x1a8] sm:$0x1]
    %v1880 = vld [vmem:[%s1853 + $0x1c0] sm:$0xff]
    %v1881 = vld [vmem:[%s1853 + $0x1c8] sm:$0x1]
    %v1882 = vld [vmem:[%s1853 + $0x1e0] sm:$0xff]
    %v1883 = vld [vmem:[%s1853 + $0x1e8] sm:$0x1]
    %v1884 = vld [vmem:[%s1853 + $0x200] sm:$0xff]
    %v1885 = vld [vmem:[%s1853 + $0x208] sm:$0x1]
    %s1886 = scalar_lea.vmem [#allocation4], 16
    %v1887 = vld [vmem:[%s1886] sm:$0xff]
    %v1888 = vld [vmem:[%s1886 + $0x10] sm:$0xff]
    %v1889 = vld [vmem:[%s1886 + $0x20] sm:$0xff]
    %v1890 = vld [vmem:[%s1886 + $0x30] sm:$0xff]
    %v1891 = vld [vmem:[%s1886 + $0x40] sm:$0xff]
    %v1892 = vld [vmem:[%s1886 + $0x50] sm:$0xff]
    %v1893 = vld [vmem:[%s1886 + $0x60] sm:$0xff]
    %v1894 = vld [vmem:[%s1886 + $0x70] sm:$0xff]
    %v1895 = vld [vmem:[%s1886 + $0x90] sm:$0xff]
    %v1896 = vld [vmem:[%s1886 + $0xa0] sm:$0xff]
    %v1897 = vld [vmem:[%s1886 + $0xb0] sm:$0xff]
    %v1898 = vld [vmem:[%s1886 + $0xc0] sm:$0xff]
    %v1899 = vld [vmem:[%s1886 + $0xd0] sm:$0xff]
    %v1900 = vld [vmem:[%s1886 + $0xe0] sm:$0xff]
    %v1901 = vld [vmem:[%s1886 + $0xf0] sm:$0xff]
    %v1902 = vld [vmem:[%s1886 + $0x100] sm:$0xff]
    %v1903 = vld [vmem:[%s3 + $0x6] sm:$0x1]
    %v1904 = vlaneseq
    %v1905 = vshrl.u32 %v1904, 7
    %v1906 = vsub.s32 0, %v1905
    %v1907 = vrot.slane %v1903, %v1906
    %v1908 = vmul.f32 %v1854, %v1907
    %v1909 = vmul.f32 %v1856, %v1907
    %v1910 = vmul.f32 %v1858, %v1907
    %v1911 = vmul.f32 %v1860, %v1907
    %v1912 = vmul.f32 %v1862, %v1907
    %v1913 = vmul.f32 %v1864, %v1907
    %v1914 = vmul.f32 %v1866, %v1907
    %v1915 = vmul.f32 %v1868, %v1907
    %v1916 = vmul.f32 %v1870, %v1907
    %v1917 = vmul.f32 %v1872, %v1907
    %v1918 = vmul.f32 %v1874, %v1907
    %v1919 = vmul.f32 %v1876, %v1907
    %v1920 = vmul.f32 %v1878, %v1907
    %v1921 = vmul.f32 %v1880, %v1907
    %v1922 = vmul.f32 %v1882, %v1907
    %v1923 = vmul.f32 %v1884, %v1907
    %v1924 = vadd.f32 %v1837, %v1908
    %v1925 = vadd.f32 %v1838, %v1909
    %v1926 = vadd.f32 %v1839, %v1910
    %v1927 = vadd.f32 %v1840, %v1911
    %v1928 = vadd.f32 %v1841, %v1912
    %v1929 = vadd.f32 %v1842, %v1913
    %v1930 = vadd.f32 %v1843, %v1914
    %v1931 = vadd.f32 %v1844, %v1915
    %v1932 = vadd.f32 %v1845, %v1916
    %v1933 = vadd.f32 %v1846, %v1917
    %v1934 = vadd.f32 %v1847, %v1918
    %v1935 = vadd.f32 %v1848, %v1919
    %v1936 = vadd.f32 %v1849, %v1920
    %v1937 = vadd.f32 %v1850, %v1921
    %v1938 = vadd.f32 %v1851, %v1922
    %v1939 = vadd.f32 %v1852, %v1923
    %v1940 = vld [vmem:[%s3 + $0x7] sm:$0x1]
    %v1941 = vlaneseq
    %v1942 = vshrl.u32 %v1941, 7
    %v1943 = vsub.s32 0, %v1942
    %v1944 = vrot.slane %v1940, %v1943
    %v1945 = vmul.f32 %v1887, %v1944
    %v1946 = vmul.f32 %v1888, %v1944
    %v1947 = vmul.f32 %v1889, %v1944
    %v1948 = vmul.f32 %v1890, %v1944
    %v1949 = vmul.f32 %v1891, %v1944
    %v1950 = vmul.f32 %v1892, %v1944
    %v1951 = vmul.f32 %v1893, %v1944
    %v1952 = vmul.f32 %v1894, %v1944
    %v1953 = vmul.f32 %v1895, %v1944
    %v1954 = vmul.f32 %v1896, %v1944
    %v1955 = vmul.f32 %v1897, %v1944
    %v1956 = vmul.f32 %v1898, %v1944
    %v1957 = vmul.f32 %v1899, %v1944
    %v1958 = vmul.f32 %v1900, %v1944
    %v1959 = vmul.f32 %v1901, %v1944
    %v1960 = vmul.f32 %v1902, %v1944
    %v1961 = vadd.f32 %v1924, %v1945
    %v1962 = vadd.f32 %v1925, %v1946
    %v1963 = vadd.f32 %v1926, %v1947
    %v1964 = vadd.f32 %v1927, %v1948
    %v1965 = vadd.f32 %v1928, %v1949
    %v1966 = vadd.f32 %v1929, %v1950
    %v1967 = vadd.f32 %v1930, %v1951
    %v1968 = vadd.f32 %v1931, %v1952
    %v1969 = vadd.f32 %v1932, %v1953
    %v1970 = vadd.f32 %v1933, %v1954
    %v1971 = vadd.f32 %v1934, %v1955
    %v1972 = vadd.f32 %v1935, %v1956
    %v1973 = vadd.f32 %v1936, %v1957
    %v1974 = vadd.f32 %v1937, %v1958
    %v1975 = vadd.f32 %v1938, %v1959
    %v1976 = vadd.f32 %v1939, %v1960
    %v1977 = vld [vmem:[%s3 + $0x8] sm:$0x1]
    %v1978 = vlaneseq
    %v1979 = vshrl.u32 %v1978, 7
    %v1980 = vsub.s32 0, %v1979
    %v1981 = vrot.slane %v1977, %v1980
    %v1982 = vmul.f32 %v1854, %v1981
    %v1983 = vmul.f32 %v1855, %v1981
    %v1984 = vmul.f32 %v1856, %v1981
    %v1985 = vmul.f32 %v1857, %v1981
    %v1986 = vmul.f32 %v1858, %v1981
    %v1987 = vmul.f32 %v1859, %v1981
    %v1988 = vmul.f32 %v1860, %v1981
    %v1989 = vmul.f32 %v1861, %v1981
    %v1990 = vmul.f32 %v1862, %v1981
    %v1991 = vmul.f32 %v1863, %v1981
    %v1992 = vmul.f32 %v1864, %v1981
    %v1993 = vmul.f32 %v1865, %v1981
    %v1994 = vmul.f32 %v1866, %v1981
    %v1995 = vmul.f32 %v1867, %v1981
    %v1996 = vmul.f32 %v1868, %v1981
    %v1997 = vmul.f32 %v1869, %v1981
    %v1998 = vmul.f32 %v1870, %v1981
    %v1999 = vmul.f32 %v1871, %v1981
    %v2000 = vmul.f32 %v1872, %v1981
    %v2001 = vmul.f32 %v1873, %v1981
    %v2002 = vmul.f32 %v1874, %v1981
    %v2003 = vmul.f32 %v1875, %v1981
    %v2004 = vmul.f32 %v1876, %v1981
    %v2005 = vmul.f32 %v1877, %v1981
    %v2006 = vmul.f32 %v1878, %v1981
    %v2007 = vmul.f32 %v1879, %v1981
    %v2008 = vmul.f32 %v1880, %v1981
    %v2009 = vmul.f32 %v1881, %v1981
    %v2010 = vmul.f32 %v1882, %v1981
    %v2011 = vmul.f32 %v1883, %v1981
    %v2012 = vmul.f32 %v1884, %v1981
    %v2013 = vmul.f32 %v1885, %v1981
    %v2046 = vrot.slane %v1982, 1
    %v2047 = vrot.slane %v1983, 1
    %v2048 = vsel %vm1499, %v2046, %v2047
    %v2049 = vrot.slane %v1984, 1
    %v2050 = vrot.slane %v1985, 1
    %v2051 = vsel %vm1499, %v2049, %v2050
    %v2052 = vrot.slane %v1986, 1
    %v2053 = vrot.slane %v1987, 1
    %v2054 = vsel %vm1499, %v2052, %v2053
    %v2055 = vrot.slane %v1988, 1
    %v2056 = vrot.slane %v1989, 1
    %v2057 = vsel %vm1499, %v2055, %v2056
    %v2058 = vrot.slane %v1990, 1
    %v2059 = vrot.slane %v1991, 1
    %v2060 = vsel %vm1499, %v2058, %v2059
    %v2061 = vrot.slane %v1992, 1
    %v2062 = vrot.slane %v1993, 1
    %v2063 = vsel %vm1499, %v2061, %v2062
    %v2064 = vrot.slane %v1994, 1
    %v2065 = vrot.slane %v1995, 1
    %v2066 = vsel %vm1499, %v2064, %v2065
    %v2067 = vrot.slane %v1996, 1
    %v2068 = vrot.slane %v1997, 1
    %v2069 = vsel %vm1499, %v2067, %v2068
    %v2070 = vrot.slane %v1998, 1
    %v2071 = vrot.slane %v1999, 1
    %v2072 = vsel %vm1499, %v2070, %v2071
    %v2073 = vrot.slane %v2000, 1
    %v2074 = vrot.slane %v2001, 1
    %v2075 = vsel %vm1499, %v2073, %v2074
    %v2076 = vrot.slane %v2002, 1
    %v2077 = vrot.slane %v2003, 1
    %v2078 = vsel %vm1499, %v2076, %v2077
    %v2079 = vrot.slane %v2004, 1
    %v2080 = vrot.slane %v2005, 1
    %v2081 = vsel %vm1499, %v2079, %v2080
    %v2082 = vrot.slane %v2006, 1
    %v2083 = vrot.slane %v2007, 1
    %v2084 = vsel %vm1499, %v2082, %v2083
    %v2085 = vrot.slane %v2008, 1
    %v2086 = vrot.slane %v2009, 1
    %v2087 = vsel %vm1499, %v2085, %v2086
    %v2088 = vrot.slane %v2010, 1
    %v2089 = vrot.slane %v2011, 1
    %v2090 = vsel %vm1499, %v2088, %v2089
    %v2091 = vrot.slane %v2012, 1
    %v2092 = vrot.slane %v2013, 1
    %v2093 = vsel %vm1499, %v2091, %v2092
    %v2110 = vadd.f32 %v1961, %v2048
    %v2111 = vadd.f32 %v1962, %v2051
    %v2112 = vadd.f32 %v1963, %v2054
    %v2113 = vadd.f32 %v1964, %v2057
    %v2114 = vadd.f32 %v1965, %v2060
    %v2115 = vadd.f32 %v1966, %v2063
    %v2116 = vadd.f32 %v1967, %v2066
    %v2117 = vadd.f32 %v1968, %v2069
    %v2118 = vadd.f32 %v1969, %v2072
    %v2119 = vadd.f32 %v1970, %v2075
    %v2120 = vadd.f32 %v1971, %v2078
    %v2121 = vadd.f32 %v1972, %v2081
    %v2122 = vadd.f32 %v1973, %v2084
    %v2123 = vadd.f32 %v1974, %v2087
    %v2124 = vadd.f32 %v1975, %v2090
    %v2125 = vadd.f32 %v1976, %v2093
    %v2126 = vlaneseq
    %v2127 = vshrl.u32 %v2126, 7
    %v2128 = vsub.s32 0, %v2127
    %v2129 = vrot.slane %v55, %v2128
    %v2130 = vadd.f32 %v2110, %v2129
    %v2131 = vadd.f32 %v2111, %v2129
    %v2132 = vadd.f32 %v2112, %v2129
    %v2133 = vadd.f32 %v2113, %v2129
    %v2134 = vadd.f32 %v2114, %v2129
    %v2135 = vadd.f32 %v2115, %v2129
    %v2136 = vadd.f32 %v2116, %v2129
    %v2137 = vadd.f32 %v2117, %v2129
    %v2138 = vadd.f32 %v2118, %v2129
    %v2139 = vadd.f32 %v2119, %v2129
    %v2140 = vadd.f32 %v2120, %v2129
    %v2141 = vadd.f32 %v2121, %v2129
    %v2142 = vadd.f32 %v2122, %v2129
    %v2143 = vadd.f32 %v2123, %v2129
    %v2144 = vadd.f32 %v2124, %v2129
    %v2145 = vadd.f32 %v2125, %v2129
    %vm2146 = vcmp.gt.f32.partialorder %v2130, 0.0
    %vm2147 = vcmp.gt.f32.partialorder %v2131, 0.0
    %vm2148 = vcmp.gt.f32.partialorder %v2132, 0.0
    %vm2149 = vcmp.gt.f32.partialorder %v2133, 0.0
    %vm2150 = vcmp.gt.f32.partialorder %v2134, 0.0
    %vm2151 = vcmp.gt.f32.partialorder %v2135, 0.0
    %vm2152 = vcmp.gt.f32.partialorder %v2136, 0.0
    %vm2153 = vcmp.gt.f32.partialorder %v2137, 0.0
    %vm2154 = vcmp.gt.f32.partialorder %v2138, 0.0
    %vm2155 = vcmp.gt.f32.partialorder %v2139, 0.0
    %vm2156 = vcmp.gt.f32.partialorder %v2140, 0.0
    %vm2157 = vcmp.gt.f32.partialorder %v2141, 0.0
    %vm2158 = vcmp.gt.f32.partialorder %v2142, 0.0
    %vm2159 = vcmp.gt.f32.partialorder %v2143, 0.0
    %vm2160 = vcmp.gt.f32.partialorder %v2144, 0.0
    %vm2161 = vcmp.gt.f32.partialorder %v2145, 0.0
    %v2162 = vlaneseq
    %v2163 = vshrl.u32 %v2162, 7
    %v2164 = vsub.s32 0, %v2163
    %v2165 = vrot.slane %v56, %v2164
    %v2166 = vmul.f32 %v2165, %v2130
    %v2167 = vmul.f32 %v2165, %v2131
    %v2168 = vmul.f32 %v2165, %v2132
    %v2169 = vmul.f32 %v2165, %v2133
    %v2170 = vmul.f32 %v2165, %v2134
    %v2171 = vmul.f32 %v2165, %v2135
    %v2172 = vmul.f32 %v2165, %v2136
    %v2173 = vmul.f32 %v2165, %v2137
    %v2174 = vmul.f32 %v2165, %v2138
    %v2175 = vmul.f32 %v2165, %v2139
    %v2176 = vmul.f32 %v2165, %v2140
    %v2177 = vmul.f32 %v2165, %v2141
    %v2178 = vmul.f32 %v2165, %v2142
    %v2179 = vmul.f32 %v2165, %v2143
    %v2180 = vmul.f32 %v2165, %v2144
    %v2181 = vmul.f32 %v2165, %v2145
    %v2182 = vsel %vm2146, %v2130, %v2166
    %v2183 = vsel %vm2147, %v2131, %v2167
    %v2184 = vsel %vm2148, %v2132, %v2168
    %v2185 = vsel %vm2149, %v2133, %v2169
    %v2186 = vsel %vm2150, %v2134, %v2170
    %v2187 = vsel %vm2151, %v2135, %v2171
    %v2188 = vsel %vm2152, %v2136, %v2172
    %v2189 = vsel %vm2153, %v2137, %v2173
    %v2190 = vsel %vm2154, %v2138, %v2174
    %v2191 = vsel %vm2155, %v2139, %v2175
    %v2192 = vsel %vm2156, %v2140, %v2176
    %v2193 = vsel %vm2157, %v2141, %v2177
    %v2194 = vsel %vm2158, %v2142, %v2178
    %v2195 = vsel %vm2159, %v2143, %v2179
    %v2196 = vsel %vm2160, %v2144, %v2180
    %v2197 = vsel %vm2161, %v2145, %v2181
    %v2198 = vpack.c.bf16 %v2183, %v2182
    %v2199 = vpack.c.bf16 %v2185, %v2184
    %v2200 = vpack.c.bf16 %v2187, %v2186
    %v2201 = vpack.c.bf16 %v2189, %v2188
    %v2202 = vpack.c.bf16 %v2191, %v2190
    %v2203 = vpack.c.bf16 %v2193, %v2192
    %v2204 = vpack.c.bf16 %v2195, %v2194
    %v2205 = vpack.c.bf16 %v2197, %v2196
    %v2206 = vld [vmem:[%s4] sm:$0xf]
    %v2207 = vld [vmem:[%s4 + $0x4] sm:$0xf]
    %v2208 = vld [vmem:[%s4 + $0x8] sm:$0xf]
    %v2209 = vld [vmem:[%s4 + $0xc] sm:$0xf]
    %v2210 = vld [vmem:[%s5] sm:$0xff]
    %v2211 = vld [vmem:[%s5 + $0x8] sm:$0xff]
    %v2212 = vld [vmem:[%s5 + $0x10] sm:$0xff]
    %v2213 = vld [vmem:[%s5 + $0x18] sm:$0xff]
    %2215 = vset.pattern.permute.xlu0 0
    %2216 = vperm.xlu0 %2215, %v2210
    %v2217 = vpop.permute.xlu0 %2216
    %2220 = vset.pattern.permute.xlu0 0
    %2221 = vperm.xlu0 %2220, %v2211
    %v2222 = vpop.permute.xlu0 %2221
    %2225 = vset.pattern.permute.xlu0 0
    %2226 = vperm.xlu0 %2225, %v2212
    %v2227 = vpop.permute.xlu0 %2226
    %2230 = vset.pattern.permute.xlu0 0
    %2231 = vperm.xlu0 %2230, %v2213
    %v2232 = vpop.permute.xlu0 %2231
    %v2238 = vunpack.c.l.b16 %v2206
    %v2239 = vunpack.c.l.b16 %v2207
    %v2240 = vunpack.c.l.b16 %v2208
    %v2241 = vunpack.c.l.b16 %v2209
    %v2242 = vpack.c.b16 %v2239, %v2238
    %v2243 = vpack.c.b16 %v2241, %v2240
    %v2245 = vsel %vm875, %v2242, 0
    %v2248 = vsel %vm875, %v2243, 0
    %v2251 = vsel %vm875, %v2198, 0
    %v2254 = vsel %vm875, %v2199, 0
    %v2257 = vsel %vm875, %v2200, 0
    %v2260 = vsel %vm875, %v2201, 0
    %v2263 = vsel %vm875, %v2202, 0
    %v2266 = vsel %vm875, %v2203, 0
    %v2269 = vsel %vm875, %v2204, 0
    %v2272 = vsel %vm875, %v2205, 0
    %2274 = vmatprep.subr.bf16.mxu0 0
    %2275 = vmatpush1.bf16.xpose.msra.mxu0 %v2272
    %2276 = vmatprep.subr.bf16.mxu0 0
    %2277 = vmatpush1.bf16.xpose.msra.mxu0 %v2269
    %2278 = vmatprep.subr.bf16.mxu0 0
    %2279 = vmatpush1.bf16.xpose.msra.mxu0 %v2266
    %2280 = vmatprep.subr.bf16.mxu0 0
    %2281 = vmatpush1.bf16.xpose.msra.mxu0 %v2263
    %2282 = vmatprep.subr.bf16.mxu0 0
    %2283 = vmatpush1.bf16.xpose.msra.mxu0 %v2260
    %2284 = vmatprep.subr.bf16.mxu0 0
    %2285 = vmatpush1.bf16.xpose.msra.mxu0 %v2257
    %2286 = vmatprep.subr.bf16.mxu0 0
    %2287 = vmatpush1.bf16.xpose.msra.mxu0 %v2254
    %2288 = vmatprep.subr.bf16.mxu0 0
    %2289 = vmatpush1.bf16.xpose.msra.mxu0 %v2251
    %2290 = vmatprep.subr.bf16.mxu0 0
    %2291 = vmatpush2.bf16.xpose.msra.mxu0 0
    %2292 = vmatprep.subr.bf16.mxu0 0
    %2293 = vmatpush2.bf16.xpose.msra.mxu0 0
    %2294 = vmatprep.subr.bf16.mxu0 0
    %2295 = vmatpush2.bf16.xpose.msra.mxu0 0
    %2296 = vmatprep.subr.bf16.mxu0 0
    %2297 = vmatpush2.bf16.xpose.msra.mxu0 0
    %2298 = vmatprep.subr.bf16.mxu0 0
    %2299 = vmatpush2.bf16.xpose.msra.mxu0 0
    %2300 = vmatprep.subr.bf16.mxu0 0
    %2301 = vmatpush2.bf16.xpose.msra.mxu0 0
    %2302 = vmatprep.subr.bf16.mxu0 0
    %2303 = vmatpush2.bf16.xpose.msra.mxu0 0
    %2304 = vmatprep.subr.bf16.mxu0 0
    %2305 = vmatpush2.bf16.xpose.msra.mxu0 0
    %2306 = vmatprep.mubr.bf16.mxu0 0
    %2307 = vmatmul.mubr.bf16.gmra.mxu0 %v2245
    %v2308 = vpop.f32.mrf.mxu0
    %v2309 = vadd.f32 %v2217, %v2308
    %v2310 = vpop.f32.mrf.mxu0
    %v2311 = vpop.f32.mrf.mxu0
    %v2312 = vadd.f32 %v2222, %v2311
    %v2313 = vpop.f32.mrf.mxu0
    %2314 = vmatprep.mubr.bf16.mxu0 0
    %2315 = vmatmul.mubr.bf16.gmra.mxu0 %v2248
    %v2316 = vpop.f32.mrf.mxu0
    %v2317 = vadd.f32 %v2227, %v2316
    %v2318 = vpop.f32.mrf.mxu0
    %v2319 = vpop.f32.mrf.mxu0
    %v2320 = vadd.f32 %v2232, %v2319
    %v2321 = vpop.f32.mrf.mxu0
    %2322 = vdwg.mxu0
    %2323 = vst [vmem:[#allocation10] sm:$0xff] %v2309
    %2324 = vst [vmem:[#allocation10 + $0x8] sm:$0xff] %v2312
    %2325 = vst [vmem:[#allocation10 + $0x10] sm:$0xff] %v2317
    %2326 = vst [vmem:[#allocation10 + $0x18] sm:$0xff] %v2320
    // Predicated region
    $region34: #{tpu_custom_call.1} parent=1 // pred_check
      _
    $region35: #{tpu_custom_call.1} parent=1 // pred_check_branch
      %2328 = sbr.rel (0) target = $region37
    $region36: #{tpu_custom_call.1} parent=1 // pred_region
      %s2330 = ssub.s32 512, 512
      %2331 = vsyncadd [#allocation7], %s2330
      %s2332 = sshll.u32 [#allocation10], 4
      %s2333 = int_to_ptr.vmem [resolvable:$true] %s2332
      %2338 = dma.vmem_to_hbm [thread:$0]  %s2333, 512, %s6, [#allocation7], 128, 128, 8
    $region37: #{tpu_custom_call.1} parent=1 // pred_fallthru
      _
    // Predicated region
    $region38: #{tpu_custom_call.1} parent=1 // pred_check
      _
    $region39: #{tpu_custom_call.1} parent=1 // pred_check_branch
      %2340 = sbr.rel (0) target = $region41
    $region40: #{tpu_custom_call.1} parent=1 // pred_region
      %2341 = dma.done [#allocation7], 512
    $region41: #{tpu_custom_call.1} parent=1 // pred_fallthru
      _
    %2342 = vsyncpa [#allocation6], 1
    %2343 = vsyncpa [#allocation9], 1
    %2344 = vsyncpa [#allocation7], 1

</llo_original>
